<compile_context>
chip_gen: v5e
topology: v5e:2x2
jax: 0.10.0
libtpu: 0.0.40
codegen_flags: <defaults>
</compile_context>

<pallas_src>
from functools import partial

import jax
import jax.numpy as jnp
from jax.experimental import pallas as pl
from jax.experimental.pallas import tpu as pltpu

LANES = 128


def _att_head_kernel(x_ref, p_ref, w1_ref, b1_ref, wc_ref, bc_ref,
                     packed_ref, fix_ref, att_ref,
                     *, eps, n_pad, start, ts, p_static):
    bblk = x_ref.shape[0]

    # ---- GeM pooling over the frequency axis --------------------------------
    # x block is the original (Bblk, C, F, T) layout; the centered inference
    # window is a static in-kernel slice (no wrapper-side copy/transpose of x).
    xs = x_ref[:, :, :, start:start + ts]          # (Bblk, C, F, Ts) f32
    xc = jnp.maximum(xs, eps)
    if p_static is not None:
        # frozen small-integer p: plain VPU multiplies, no EUP exp/log
        xp = xc
        for _ in range(p_static - 1):
            xp = xp * xc
        inv_p = 1.0 / float(p_static)
    else:
        p = p_ref[0]                               # GeM exponent (SMEM scalar)
        xp = jnp.exp(jnp.log(xc) * p)              # clamp(eps) ** p
        inv_p = 1.0 / p
    pooled = jnp.mean(xp, axis=2)                  # avg_pool over F -> (Bblk, C, Ts)
    pooled = jnp.exp(jnp.log(pooled) * inv_p)      # ** (1/p)

    # ---- fold batch into the MXU M dimension --------------------------------
    pooled = jnp.transpose(pooled, (0, 2, 1))      # (Bblk, Ts, C)  tiny XLU transpose
    pooled = pooled.reshape(bblk * ts, -1)         # (Bblk*Ts, C)

    # ---- dense_layers: Linear(C -> H) + ReLU (dropout = identity in eval) ---
    h = jnp.dot(pooled.astype(jnp.bfloat16), w1_ref[...],
                preferred_element_type=jnp.float32) + b1_ref[...]
    h = jnp.maximum(h, 0.0)                        # (Bblk*Ts, H) f32

    # ---- fused attention + fix_scale 1x1 convs (one MXU matmul) -------------
    comb = jnp.dot(h.astype(jnp.bfloat16), wc_ref[...],
                   preferred_element_type=jnp.float32) + bc_ref[...]
    comb = comb.reshape(bblk, ts, 2 * n_pad)       # (Bblk, Ts, 2*Np)
    time_att = jnp.tanh(comb[:, :, :n_pad])        # (Bblk, Ts, Np)
    fix = comb[:, :, n_pad:]                       # (Bblk, Ts, Np)  (128-aligned slice)

    # ---- softmax over time + attention-weighted sums ------------------------
    m = jnp.max(time_att, axis=1, keepdims=True)
    e = jnp.exp(time_att - m)
    att = e / jnp.sum(e, axis=1, keepdims=True)    # (Bblk, Ts, Np)

    logit = jnp.sum(fix * att, axis=1)                     # (Bblk, Np)
    clip = jnp.sum(jax.nn.sigmoid(fix) * att, axis=1)      # (Bblk, Np)

    # two direct lane-dense row stores: row 0 = logits, row 1 = clipwise_pred
    packed_ref[:, 0:1, :] = logit[:, None, :]
    packed_ref[:, 1:2, :] = clip[:, None, :]
    fix_ref[...] = fix
    att_ref[...] = time_att


def _pick_block_batch(B, Ts, x_item_bytes, *, max_rows=512, max_x_bytes=8 << 20):
    """Largest divisor of B such that (a) >= 2 grid steps remain when B >= 2
    (v7x has 2 TensorCores; the grid axis is marked "parallel") and (b) the
    per-step MXU row count / input block stay modest (VMEM guard; v7x: 64 MiB)."""
    best = 1
    for d in range(1, B + 1):
        if B % d:
            continue
        if d > 1 and (d * Ts > max_rows or d * x_item_bytes > max_x_bytes):
            continue
        if B >= 2 and (B // d) < 2:
            continue
        best = d
    return best


def att_head_forward(x, params, *, train_period=15.0, infer_period=5.0,
                     eps=1e-6, training=False, slice_padded_classes=True):
    """x: (B, C, F, T) float32.  Returns (logits, clipwise_pred, fix_out, time_att_out)."""
    B, C, F, T = x.shape
    H = params["w1"].shape[1]
    N = params["wa"].shape[1]
    n_pad = ((N + LANES - 1) // LANES) * LANES      # class dim padded to 128 lanes

    if training or train_period == infer_period:
        start, end = 0, T
    else:
        frac = infer_period / train_period
        start_f = T / 2 - T * frac / 2
        end_f = start_f + T * frac
        start, end = int(start_f), int(end_f)
    Ts = end - start

    # Specialize the GeM exponent to integer multiplies when it is a frozen small
    # integer (common inference case p=3); fall back to the SMEM exp/log path
    # when p is traced (e.g. learned p under jit).
    p_static = None
    try:
        pv = float(jnp.reshape(params["p"], (-1,))[0])
        if abs(pv - round(pv)) < 1e-6 and 1 <= round(pv) <= 8:
            p_static = int(round(pv))
    except (jax.errors.ConcretizationTypeError, TypeError):
        p_static = None

    # Fuse attention + fix_scale weights and zero-pad the class dim to n_pad.
    def pad_w(w):   # (H, N) -> (H, n_pad)
        return jnp.pad(w, ((0, 0), (0, n_pad - N)))

    def pad_b(b):   # (N,) -> (n_pad,)
        return jnp.pad(b, (0, n_pad - N))

    w1 = params["w1"].astype(jnp.bfloat16)                       # (C, H)
    b1 = params["b1"].reshape(1, H).astype(jnp.float32)
    w_comb = jnp.concatenate([pad_w(params["wa"]), pad_w(params["wf"])],
                             axis=1).astype(jnp.bfloat16)        # (H, 2*n_pad)
    b_comb = jnp.concatenate([pad_b(params["ba"]), pad_b(params["bf"])]
                             ).reshape(1, 2 * n_pad).astype(jnp.float32)
    p1 = params["p"].reshape(1).astype(jnp.float32)              # SMEM scalar

    Bblk = _pick_block_batch(B, Ts, C * F * T * 4)
    grid = (B // Bblk,)

    kernel = partial(_att_head_kernel, eps=eps, n_pad=n_pad,
                     start=start, ts=Ts, p_static=p_static)

    # Constant index_map: these blocks are never re-fetched across grid steps.
    # (pipeline_mode=pl.Buffered(1) would also halve their VMEM footprint; only
    #  relevant once H*n_pad grows into the MiB range.)
    const = lambda shp: pl.BlockSpec(shp, lambda b: tuple(0 for _ in shp))

    out_shapes = (
        jax.ShapeDtypeStruct((B, 2, n_pad), jnp.float32),    # row0=logits, row1=clipwise
        jax.ShapeDtypeStruct((B, Ts, n_pad), jnp.float32),   # fix_scale(feat).permute(0,2,1)
        jax.ShapeDtypeStruct((B, Ts, n_pad), jnp.float32),   # time_att.permute(0,2,1)
    )

    packed, fix_out, att_out = pl.pallas_call(
        kernel,
        out_shape=out_shapes,
        grid_spec=pltpu.PrefetchScalarGridSpec(
            num_scalar_prefetch=0,
            grid=grid,
            in_specs=[
                # Original-layout input block: last two dims equal the full array
                # dims so no (8,128) block constraint applies; the time window is
                # sliced in-kernel (no wrapper-side HBM transpose/slice pass).
                pl.BlockSpec((Bblk, C, F, T), lambda b: (b, 0, 0, 0)),   # feat
                pl.BlockSpec(memory_space=pltpu.MemorySpace.SMEM),       # p (scalar)
                const((C, H)),             # w1 (Linear weight, transposed)
                const((1, H)),             # b1
                const((H, 2 * n_pad)),     # [wa | wf] fused 1x1-conv weights
                const((1, 2 * n_pad)),     # [ba | bf]
            ],
            out_specs=[
                pl.BlockSpec((Bblk, 2, n_pad), lambda b: (b, 0, 0)),
                pl.BlockSpec((Bblk, Ts, n_pad), lambda b: (b, 0, 0)),
                pl.BlockSpec((Bblk, Ts, n_pad), lambda b: (b, 0, 0)),
            ],
        ),
        compiler_params=pltpu.CompilerParams(
            # batch blocks are independent -> v7x shards them over its 2 TCs
            dimension_semantics=("parallel",),
            # NOTE(scaling): per-step working set (2x input block + weights +
            # 2x each output block) is <1 MiB at these head sizes; recompute and
            # pass vmem_limit_bytes when growing Bblk/Ts/H/n_pad (v7x: 64 MiB).
        ),
    )(x, p1, w1, b1, w_comb, b_comb)

    logits = packed[:, 0, :N]
    clipwise = packed[:, 1, :N]
    if not slice_padded_classes:
        # Consumers that can mask/ignore the zero-padded class columns avoid an
        # extra HBM read+write pass over the two largest outputs.
        return logits, clipwise, fix_out, att_out
    return logits, clipwise, fix_out[:, :, :N], att_out[:, :, :N]


def _ref_forward(x, params, start, end, eps):
    """Pure-JAX reference with the same bf16-matmul / f32-accumulate numerics."""
    p = params["p"][0]
    xs = x[:, :, :, start:end]
    xc = jnp.maximum(xs, eps)
    pooled = jnp.mean(xc ** p, axis=2) ** (1.0 / p)              # (B, C, Ts)
    y = jnp.transpose(pooled, (0, 2, 1))                         # (B, Ts, C)
    h = jnp.einsum("btc,ch->bth", y.astype(jnp.bfloat16),
                   params["w1"].astype(jnp.bfloat16),
                   preferred_element_type=jnp.float32) + params["b1"]
    h = jax.nn.relu(h)
    hb = h.astype(jnp.bfloat16)
    ta = jnp.tanh(jnp.einsum("bth,hn->btn", hb, params["wa"].astype(jnp.bfloat16),
                             preferred_element_type=jnp.float32) + params["ba"])
    fix = jnp.einsum("bth,hn->btn", hb, params["wf"].astype(jnp.bfloat16),
                     preferred_element_type=jnp.float32) + params["bf"]
    att = jax.nn.softmax(ta, axis=1)
    clip = jnp.sum(jax.nn.sigmoid(fix) * att, axis=1)
    logit = jnp.sum(fix * att, axis=1)
    return logit, clip, fix, ta


def init_params(key, in_chans, num_class, hidden=512):
    k1, k2, k3, k4, k5, k6 = jax.random.split(key, 6)
    s_lin = 1.0 / jnp.sqrt(in_chans)
    s_cnv = 1.0 / jnp.sqrt(hidden)
    return {
        "p": jnp.ones((1,), jnp.float32) * 3.0,                                   # GeM exponent
        "w1": jax.random.uniform(k1, (in_chans, hidden), jnp.float32, -s_lin, s_lin),
        "b1": jax.random.uniform(k2, (hidden,), jnp.float32, -s_lin, s_lin),
        "wa": jax.random.uniform(k3, (hidden, num_class), jnp.float32, -s_cnv, s_cnv),
        "ba": jax.random.uniform(k4, (num_class,), jnp.float32, -s_cnv, s_cnv),
        "wf": jax.random.uniform(k5, (hidden, num_class), jnp.float32, -s_cnv, s_cnv),
        "bf": jax.random.uniform(k6, (num_class,), jnp.float32, -s_cnv, s_cnv),
    }


if __name__ == "__main__":
    B, C, F, T = 2, 32, 16, 12        # batch, in_chans, freq bins, time frames
    NUM_CLASS = 16
    EPS = 1e-6

    key = jax.random.PRNGKey(0)
    kx, kp = jax.random.split(key)
    x = jax.random.normal(kx, (B, C, F, T), jnp.float32)
    params = init_params(kp, C, NUM_CLASS)

    logits, clipwise, fix_out, time_att_out = att_head_forward(
        x, params, train_period=15.0, infer_period=5.0, eps=EPS, training=False)
    jax.block_until_ready((logits, clipwise, fix_out, time_att_out))

    # verify against a pure-JAX reference of the same math (same bf16 matmuls)
    frac = 5.0 / 15.0
    start = int(T / 2 - T * frac / 2)
    end = int(T / 2 - T * frac / 2 + T * frac)
    r_logits, r_clip, r_fix, r_att = _ref_forward(x, params, start, end, EPS)

    assert logits.shape == (B, NUM_CLASS)
    assert clipwise.shape == (B, NUM_CLASS)
    assert fix_out.shape == (B, end - start, NUM_CLASS)
    assert time_att_out.shape == (B, end - start, NUM_CLASS)
    assert jnp.allclose(logits, r_logits, atol=5e-3, rtol=5e-3)
    assert jnp.allclose(clipwise, r_clip, atol=5e-3, rtol=5e-3)
    assert jnp.allclose(fix_out, r_fix, atol=5e-3, rtol=5e-3)
    assert jnp.allclose(time_att_out, r_att, atol=5e-3, rtol=5e-3)

    print("KERNEL_OK")
</pallas_src>

<mosaic_0001>
module attributes {stable_mosaic.version = 11 : i64} {
  func.func @_att_head_kernel(%arg0: i32, %arg1: memref<1x32x16x12xf32, #tpu.memory_space<vmem>>, %arg2: memref<1xf32, #tpu.memory_space<smem>>, %arg3: memref<32x512xbf16, #tpu.memory_space<vmem>>, %arg4: memref<1x512xf32, #tpu.memory_space<vmem>>, %arg5: memref<512x256xbf16, #tpu.memory_space<vmem>>, %arg6: memref<1x256xf32, #tpu.memory_space<vmem>>, %arg7: memref<1x2x128xf32, #tpu.memory_space<vmem>>, %arg8: memref<1x4x128xf32, #tpu.memory_space<vmem>>, %arg9: memref<1x4x128xf32, #tpu.memory_space<vmem>>) attributes {dimension_semantics = [#tpu.dimension_semantics<parallel>], iteration_bounds = array<i64: 2>, scalar_prefetch = 0 : i64, scratch_operands = 0 : i64, tpu.core_type = #tpu.core_type<tc>, window_params = [{transform_indices = @transform_0, window_bounds = array<i64: 1, 32, 16, 12>}, {transform_indices = @transform_1, window_bounds = array<i64: 1>}, {pipeline_mode = #tpu.pipeline_mode<synchronous>, transform_indices = @transform_2, window_bounds = array<i64: 32, 512>}, {pipeline_mode = #tpu.pipeline_mode<synchronous>, transform_indices = @transform_3, window_bounds = array<i64: 1, 512>}, {pipeline_mode = #tpu.pipeline_mode<synchronous>, transform_indices = @transform_4, window_bounds = array<i64: 512, 256>}, {pipeline_mode = #tpu.pipeline_mode<synchronous>, transform_indices = @transform_5, window_bounds = array<i64: 1, 256>}, {transform_indices = @transform_6, window_bounds = array<i64: 1, 2, 128>}, {transform_indices = @transform_7, window_bounds = array<i64: 1, 4, 128>}, {transform_indices = @transform_8, window_bounds = array<i64: 1, 4, 128>}]} {
    %c0 = arith.constant 0 : index
    %c0_0 = arith.constant 0 : index
    %c0_1 = arith.constant 0 : index
    %c4 = arith.constant 4 : index
    %0 = vector.load %arg1[%c0, %c0_0, %c0_1, %c4] : memref<1x32x16x12xf32, #tpu.memory_space<vmem>>, vector<1x32x16x4xf32>
    %cst = arith.constant 9.99999997E-7 : f32
    %1 = vector.broadcast %cst : f32 to vector<1x32x16x4xf32>
    %2 = arith.maximumf %0, %1 : vector<1x32x16x4xf32>
    %3 = arith.mulf %2, %2 : vector<1x32x16x4xf32>
    %4 = arith.mulf %3, %2 : vector<1x32x16x4xf32>
    %cst_2 = arith.constant dense<0.000000e+00> : vector<1x32x4xf32>
    %5 = vector.multi_reduction <add>, %4, %cst_2 [2] : vector<1x32x16x4xf32> to vector<1x32x4xf32>
    %cst_3 = arith.constant 1.600000e+01 : f32
    %6 = vector.broadcast %cst_3 : f32 to vector<1x32x4xf32>
    %7 = arith.divf %5, %6 : vector<1x32x4xf32>
    %8 = math.log %7 : vector<1x32x4xf32>
    %cst_4 = arith.constant 0.333333343 : f32
    %9 = vector.broadcast %cst_4 : f32 to vector<1x32x4xf32>
    %10 = arith.mulf %8, %9 : vector<1x32x4xf32>
    %11 = math.exp %10 : vector<1x32x4xf32>
    %12 = tpu.transpose %11, [0, 2, 1] : vector<1x32x4xf32> -> vector<1x4x32xf32>
    %13 = vector.shape_cast %12 : vector<1x4x32xf32> to vector<4x32xf32>
    %14 = arith.truncf %13 : vector<4x32xf32> to vector<4x32xbf16>
    %c0_5 = arith.constant 0 : index
    %c0_6 = arith.constant 0 : index
    %15 = vector.load %arg3[%c0_5, %c0_6] : memref<32x512xbf16, #tpu.memory_space<vmem>>, vector<32x512xbf16>
    %cst_7 = arith.constant dense<0.000000e+00> : vector<4x512xf32>
    %16 = tpu.matmul %14, %15, %cst_7 {dimension_numbers = #tpu.dot_dimension_numbers<[1], [0], [0], [1], [0, 0, 1, 1], [], []>} : vector<4x32xbf16>, vector<32x512xbf16>, vector<4x512xf32> -> vector<4x512xf32>
    %c0_8 = arith.constant 0 : index
    %c0_9 = arith.constant 0 : index
    %17 = vector.load %arg4[%c0_8, %c0_9] : memref<1x512xf32, #tpu.memory_space<vmem>>, vector<1x512xf32>
    %18 = vector.broadcast %17 : vector<1x512xf32> to vector<4x512xf32>
    %19 = arith.addf %16, %18 : vector<4x512xf32>
    %cst_10 = arith.constant 0.000000e+00 : f32
    %20 = vector.broadcast %cst_10 : f32 to vector<4x512xf32>
    %21 = arith.maximumf %19, %20 : vector<4x512xf32>
    %22 = arith.truncf %21 : vector<4x512xf32> to vector<4x512xbf16>
    %c0_11 = arith.constant 0 : index
    %c0_12 = arith.constant 0 : index
    %23 = vector.load %arg5[%c0_11, %c0_12] : memref<512x256xbf16, #tpu.memory_space<vmem>>, vector<512x256xbf16>
    %cst_13 = arith.constant dense<0.000000e+00> : vector<4x256xf32>
    %24 = tpu.matmul %22, %23, %cst_13 {dimension_numbers = #tpu.dot_dimension_numbers<[1], [0], [0], [1], [0, 0, 1, 1], [], []>} : vector<4x512xbf16>, vector<512x256xbf16>, vector<4x256xf32> -> vector<4x256xf32>
    %c0_14 = arith.constant 0 : index
    %c0_15 = arith.constant 0 : index
    %25 = vector.load %arg6[%c0_14, %c0_15] : memref<1x256xf32, #tpu.memory_space<vmem>>, vector<1x256xf32>
    %26 = vector.broadcast %25 : vector<1x256xf32> to vector<4x256xf32>
    %27 = arith.addf %24, %26 : vector<4x256xf32>
    %28 = vector.shape_cast %27 : vector<4x256xf32> to vector<1x4x256xf32>
    %29 = vector.extract_strided_slice %28 {offsets = [0, 0, 0], sizes = [1, 4, 128], strides = [1, 1, 1]} : vector<1x4x256xf32> to vector<1x4x128xf32>
    %30 = math.tanh %29 : vector<1x4x128xf32>
    %31 = vector.extract_strided_slice %28 {offsets = [0, 0, 128], sizes = [1, 4, 128], strides = [1, 1, 1]} : vector<1x4x256xf32> to vector<1x4x128xf32>
    %cst_16 = arith.constant dense<0xFF800000> : vector<1x128xf32>
    %32 = vector.multi_reduction <maximumf>, %30, %cst_16 [1] : vector<1x4x128xf32> to vector<1x128xf32>
    %33 = vector.shape_cast %32 : vector<1x128xf32> to vector<1x1x128xf32>
    %34 = vector.broadcast %33 : vector<1x1x128xf32> to vector<1x4x128xf32>
    %35 = arith.subf %30, %34 : vector<1x4x128xf32>
    %36 = math.exp %35 : vector<1x4x128xf32>
    %cst_17 = arith.constant dense<0.000000e+00> : vector<1x128xf32>
    %37 = vector.multi_reduction <add>, %36, %cst_17 [1] : vector<1x4x128xf32> to vector<1x128xf32>
    %38 = vector.shape_cast %37 : vector<1x128xf32> to vector<1x1x128xf32>
    %39 = vector.broadcast %38 : vector<1x1x128xf32> to vector<1x4x128xf32>
    %40 = arith.divf %36, %39 : vector<1x4x128xf32>
    %41 = arith.mulf %31, %40 : vector<1x4x128xf32>
    %cst_18 = arith.constant dense<0.000000e+00> : vector<1x128xf32>
    %42 = vector.multi_reduction <add>, %41, %cst_18 [1] : vector<1x4x128xf32> to vector<1x128xf32>
    %43 = arith.negf %31 : vector<1x4x128xf32>
    %44 = math.exp %43 : vector<1x4x128xf32>
    %cst_19 = arith.constant 1.000000e+00 : f32
    %45 = vector.broadcast %cst_19 : f32 to vector<1x4x128xf32>
    %46 = arith.addf %45, %44 : vector<1x4x128xf32>
    %47 = arith.divf %45, %46 : vector<1x4x128xf32>
    %48 = arith.mulf %47, %40 : vector<1x4x128xf32>
    %cst_20 = arith.constant dense<0.000000e+00> : vector<1x128xf32>
    %49 = vector.multi_reduction <add>, %48, %cst_20 [1] : vector<1x4x128xf32> to vector<1x128xf32>
    %50 = vector.shape_cast %42 : vector<1x128xf32> to vector<1x1x128xf32>
    %c0_21 = arith.constant 0 : index
    %c0_22 = arith.constant 0 : index
    %c0_23 = arith.constant 0 : index
    %51 = vector.load %arg7[%c0_21, %c0_22, %c0_23] : memref<1x2x128xf32, #tpu.memory_space<vmem>>, vector<1x1x128xf32>
    tpu.vector_store %arg7[%c0_21, %c0_22, %c0_23], %50 {strides = array<i32>} : memref<1x2x128xf32, #tpu.memory_space<vmem>>, vector<1x1x128xf32>,
    %52 = vector.shape_cast %49 : vector<1x128xf32> to vector<1x1x128xf32>
    %c0_24 = arith.constant 0 : index
    %c1 = arith.constant 1 : index
    %c0_25 = arith.constant 0 : index
    %53 = vector.load %arg7[%c0_24, %c1, %c0_25] : memref<1x2x128xf32, #tpu.memory_space<vmem>>, vector<1x1x128xf32>
    tpu.vector_store %arg7[%c0_24, %c1, %c0_25], %52 {strides = array<i32>} : memref<1x2x128xf32, #tpu.memory_space<vmem>>, vector<1x1x128xf32>,
    %c0_26 = arith.constant 0 : index
    %c0_27 = arith.constant 0 : index
    %c0_28 = arith.constant 0 : index
    %54 = vector.load %arg8[%c0_26, %c0_27, %c0_28] : memref<1x4x128xf32, #tpu.memory_space<vmem>>, vector<1x4x128xf32>
    tpu.vector_store %arg8[%c0_26, %c0_27, %c0_28], %31 {strides = array<i32>} : memref<1x4x128xf32, #tpu.memory_space<vmem>>, vector<1x4x128xf32>,
    %c0_29 = arith.constant 0 : index
    %c0_30 = arith.constant 0 : index
    %c0_31 = arith.constant 0 : index
    %55 = vector.load %arg9[%c0_29, %c0_30, %c0_31] : memref<1x4x128xf32, #tpu.memory_space<vmem>>, vector<1x4x128xf32>
    tpu.vector_store %arg9[%c0_29, %c0_30, %c0_31], %30 {strides = array<i32>} : memref<1x4x128xf32, #tpu.memory_space<vmem>>, vector<1x4x128xf32>,
    return
  }
  func.func @transform_0(%arg0: i32) -> (i32, i32, i32, i32) {
    %c0_i32 = arith.constant 0 : i32
    %c0_i32_0 = arith.constant 0 : i32
    %c0_i32_1 = arith.constant 0 : i32
    %c0_i32_2 = arith.constant 0 : i32
    return %arg0, %c0_i32, %c0_i32_0, %c0_i32_1 : i32, i32, i32, i32
  }
  func.func @transform_1(%arg0: i32) -> i32 {
    %c0_i32 = arith.constant 0 : i32
    %c0_i32_0 = arith.constant 0 : i32
    return %c0_i32 : i32
  }
  func.func @transform_2(%arg0: i32) -> (i32, i32) {
    %c0_i32 = arith.constant 0 : i32
    %c0_i32_0 = arith.constant 0 : i32
    %c0_i32_1 = arith.constant 0 : i32
    return %c0_i32, %c0_i32_0 : i32, i32
  }
  func.func @transform_3(%arg0: i32) -> (i32, i32) {
    %c0_i32 = arith.constant 0 : i32
    %c0_i32_0 = arith.constant 0 : i32
    %c0_i32_1 = arith.constant 0 : i32
    return %c0_i32, %c0_i32_0 : i32, i32
  }
  func.func @transform_4(%arg0: i32) -> (i32, i32) {
    %c0_i32 = arith.constant 0 : i32
    %c0_i32_0 = arith.constant 0 : i32
    %c0_i32_1 = arith.constant 0 : i32
    return %c0_i32, %c0_i32_0 : i32, i32
  }
  func.func @transform_5(%arg0: i32) -> (i32, i32) {
    %c0_i32 = arith.constant 0 : i32
    %c0_i32_0 = arith.constant 0 : i32
    %c0_i32_1 = arith.constant 0 : i32
    return %c0_i32, %c0_i32_0 : i32, i32
  }
  func.func @transform_6(%arg0: i32) -> (i32, i32, i32) {
    %c0_i32 = arith.constant 0 : i32
    %c0_i32_0 = arith.constant 0 : i32
    %c0_i32_1 = arith.constant 0 : i32
    return %arg0, %c0_i32, %c0_i32_0 : i32, i32, i32
  }
  func.func @transform_7(%arg0: i32) -> (i32, i32, i32) {
    %c0_i32 = arith.constant 0 : i32
    %c0_i32_0 = arith.constant 0 : i32
    %c0_i32_1 = arith.constant 0 : i32
    return %arg0, %c0_i32, %c0_i32_0 : i32, i32, i32
  }
  func.func @transform_8(%arg0: i32) -> (i32, i32, i32) {
    %c0_i32 = arith.constant 0 : i32
    %c0_i32_0 = arith.constant 0 : i32
    %c0_i32_1 = arith.constant 0 : i32
    return %arg0, %c0_i32, %c0_i32_0 : i32, i32, i32
  }
}

</mosaic_0001>

<llo_original>
// kernel: tpu_custom_call.1
$region0: #{tpu_custom_call.1}
  #allocation0 [shape = 'u32[]', space=smem, size = 0x4, offset = 0x4, fixed_abs, tag = 'smem constant byte address 0x4 - core index']
  #allocation1 [shape = 'u32[72,128]{1,0:T(1,128)}', space=vmem, size = 0x9000, scoped, tag = 'internal scratch']
  #allocation2 [shape = 'f32[1]{0:T(128)S(6)}', space=smem, size = 0x200, scoped, tag = 'scoped memory for tpu_custom_call.1']
  %s0 = inlined_call_operand.vmem [shape: f32[2,32,16,12], index: 0, kind: input, shape index: {}]
  %s1 = inlined_call_operand.<no memory space> [shape: f32[1], index: 1, kind: input, shape index: {}]
  %s2 = inlined_call_operand.vmem [shape: bf16[32,512], index: 2, kind: input, shape index: {}]
  %s3 = inlined_call_operand.vmem [shape: f32[1,512], index: 3, kind: input, shape index: {}]
  %s4 = inlined_call_operand.vmem [shape: bf16[512,256], index: 4, kind: input, shape index: {}]
  %s5 = inlined_call_operand.vmem [shape: f32[1,256], index: 5, kind: input, shape index: {}]
  %s6 = inlined_call_operand.hbm [shape: f32[2,2,128], index: 6, kind: output, shape index: {0}]
  %s7 = inlined_call_operand.hbm [shape: f32[2,4,128], index: 7, kind: output, shape index: {1}]
  %s8 = inlined_call_operand.hbm [shape: f32[2,4,128], index: 8, kind: output, shape index: {2}]
  %9 = xla_tuple %s6, %s7, %s8
  %s10 = sld [smem:[#allocation0]]
  $region73: #{tpu_custom_call.1} parent=0
    _
  %s12 = ssub.s32 1, %s10
  %s13 = scalar_select 0, %s12, %s10
  %14 = sst [smem:[#allocation2]] %s1
  $region1: #{tpu_custom_call.1} parent=0
    #allocation3 [shape = 'u8[2048]{0}', space=vmem, size = 0x800, scoped, tag = 'output window, operand 0']
    #allocation4 [shape = 's32[2]{0}', space=sflag, size = 0x8, scoped, tag = 'scoped memory for tpu_custom_call.1']
    #allocation5 [shape = 'u8[4096]{0}', space=vmem, size = 0x1000, scoped, tag = 'output window, operand 1']
    #allocation6 [shape = 's32[2]{0}', space=sflag, size = 0x8, scoped, tag = 'scoped memory for tpu_custom_call.1']
    #allocation7 [shape = 'u8[4096]{0}', space=vmem, size = 0x1000, scoped, tag = 'output window, operand 2']
    %15 = vsyncpa [#allocation4], 0
    %s16 = scalar_lea.sflag [#allocation4], 1
    %17 = vsyncpa %s16, 0
    %18 = vsyncpa [#allocation6], 0
    %s19 = scalar_lea.sflag [#allocation6], 1
    %20 = vsyncpa %s19, 0
    loop: start=0, step=1, limit=4
    $region2: #{tpu_custom_call.1} parent=1 // loop_pre_header
      _
    $region3: #{tpu_custom_call.1} parent=1 // loop_header
      %s22 = sphi 0, %s26
      %p23 = scmp.ge.s32.totalorder %s22, 4
      %s32 = sphi 0, %s34
      %s35 = sphi 0, %s32
      %s36 = sphi 0, %s35
      %s52 = sphi 0, %s36
      %s56 = sphi 0, %s56
      %s58 = sphi 0, %s56
      %s59 = sphi 0, %s58
      %s73 = sphi 0, %s59
      %s77 = sphi 0, %s77
      %s79 = sphi 0, %s77
      %s80 = sphi 0, %s79
      %s94 = sphi 0, %s80
      %s98 = sphi 0, %s98
      %s100 = sphi 0, %s98
      %s101 = sphi 0, %s100
      %s115 = sphi 0, %s101
      %s119 = sphi 0, %s119
      %s121 = sphi 0, %s119
      %s122 = sphi 0, %s121
      %s136 = sphi 0, %s122
      %s140 = sphi 0, %s140
      %s142 = sphi 0, %s140
      %s143 = sphi 0, %s142
      %s157 = sphi 0, %s143
      %s163 = sphi 0, %s165
      %s166 = sphi 0, %s163
      %s167 = sphi 0, %s166
      %s183 = sphi 0, %s167
      %s189 = sphi 0, %s191
      %s192 = sphi 0, %s189
      %s193 = sphi 0, %s192
      %s209 = sphi 0, %s193
      %s215 = sphi 0, %s217
      %s218 = sphi 0, %s215
      %s219 = sphi 0, %s218
      %s235 = sphi 0, %s219
    $region4: #{tpu_custom_call.1} parent=1 // loop_header_branch
      %25 = sbr.rel (%p23) target = $region8
    $region5: #{tpu_custom_call.1} parent=1 // loop_body
      %s27 = ssub.s32 %s22, 1
      %s28 = ssub.s32 %s22, 2
      %s29 = sadd.s32 %s22, 1
      %s30 = ssub.s32 %s22, %s29
      %p31 = scmp.eq.s32.totalorder %s30, 0
      %s33 = sadd.s32 %s32, 1
      %s34 = scalar_select %p31, %s32, %s33
      %p37 = pneg %p31
      %p38 = scmp.eq.s32.totalorder %s22, 1
      %p39 = por %p37, %p38
      %p40 = scmp.ne.s32.totalorder %s32, %s35
      %p41 = scmp.eq.s32.totalorder %s22, 0
      %p42 = por %p40, %p41
      %p43 = scmp.ne.s32.totalorder %s32, %s35
      %p44 = scmp.eq.s32.totalorder %s27, 1
      %p45 = por %p43, %p44
      %p46 = scmp.ne.s32.totalorder %s35, %s36
      %p47 = scmp.eq.s32.totalorder %s27, 0
      %p48 = por %p46, %p47
      %p49 = scmp.ne.s32.totalorder %s35, %s36
      %p50 = scmp.eq.s32.totalorder %s28, 1
      %p51 = por %p49, %p50
      %p53 = scmp.ne.s32.totalorder %s36, %s52
      %p54 = scmp.eq.s32.totalorder %s28, 0
      %p55 = por %p53, %p54
      %s57 = sadd.s32 %s56, 1
      %p60 = scmp.eq.s32.totalorder %s22, 1
      %p61 = scmp.ne.s32.totalorder %s56, %s58
      %p62 = scmp.eq.s32.totalorder %s22, 0
      %p63 = por %p61, %p62
      %p64 = scmp.ne.s32.totalorder %s56, %s58
      %p65 = scmp.eq.s32.totalorder %s27, 1
      %p66 = por %p64, %p65
      %p67 = scmp.ne.s32.totalorder %s58, %s59
      %p68 = scmp.eq.s32.totalorder %s27, 0
      %p69 = por %p67, %p68
      %p70 = scmp.ne.s32.totalorder %s58, %s59
      %p71 = scmp.eq.s32.totalorder %s28, 1
      %p72 = por %p70, %p71
      %p74 = scmp.ne.s32.totalorder %s59, %s73
      %p75 = scmp.eq.s32.totalorder %s28, 0
      %p76 = por %p74, %p75
      %s78 = sadd.s32 %s77, 1
      %p81 = scmp.eq.s32.totalorder %s22, 1
      %p82 = scmp.ne.s32.totalorder %s77, %s79
      %p83 = scmp.eq.s32.totalorder %s22, 0
      %p84 = por %p82, %p83
      %p85 = scmp.ne.s32.totalorder %s77, %s79
      %p86 = scmp.eq.s32.totalorder %s27, 1
      %p87 = por %p85, %p86
      %p88 = scmp.ne.s32.totalorder %s79, %s80
      %p89 = scmp.eq.s32.totalorder %s27, 0
      %p90 = por %p88, %p89
      %p91 = scmp.ne.s32.totalorder %s79, %s80
      %p92 = scmp.eq.s32.totalorder %s28, 1
      %p93 = por %p91, %p92
      %p95 = scmp.ne.s32.totalorder %s80, %s94
      %p96 = scmp.eq.s32.totalorder %s28, 0
      %p97 = por %p95, %p96
      %s99 = sadd.s32 %s98, 1
      %p102 = scmp.eq.s32.totalorder %s22, 1
      %p103 = scmp.ne.s32.totalorder %s98, %s100
      %p104 = scmp.eq.s32.totalorder %s22, 0
      %p105 = por %p103, %p104
      %p106 = scmp.ne.s32.totalorder %s98, %s100
      %p107 = scmp.eq.s32.totalorder %s27, 1
      %p108 = por %p106, %p107
      %p109 = scmp.ne.s32.totalorder %s100, %s101
      %p110 = scmp.eq.s32.totalorder %s27, 0
      %p111 = por %p109, %p110
      %p112 = scmp.ne.s32.totalorder %s100, %s101
      %p113 = scmp.eq.s32.totalorder %s28, 1
      %p114 = por %p112, %p113
      %p116 = scmp.ne.s32.totalorder %s101, %s115
      %p117 = scmp.eq.s32.totalorder %s28, 0
      %p118 = por %p116, %p117
      %s120 = sadd.s32 %s119, 1
      %p123 = scmp.eq.s32.totalorder %s22, 1
      %p124 = scmp.ne.s32.totalorder %s119, %s121
      %p125 = scmp.eq.s32.totalorder %s22, 0
      %p126 = por %p124, %p125
      %p127 = scmp.ne.s32.totalorder %s119, %s121
      %p128 = scmp.eq.s32.totalorder %s27, 1
      %p129 = por %p127, %p128
      %p130 = scmp.ne.s32.totalorder %s121, %s122
      %p131 = scmp.eq.s32.totalorder %s27, 0
      %p132 = por %p130, %p131
      %p133 = scmp.ne.s32.totalorder %s121, %s122
      %p134 = scmp.eq.s32.totalorder %s28, 1
      %p135 = por %p133, %p134
      %p137 = scmp.ne.s32.totalorder %s122, %s136
      %p138 = scmp.eq.s32.totalorder %s28, 0
      %p139 = por %p137, %p138
      %s141 = sadd.s32 %s140, 1
      %p144 = scmp.eq.s32.totalorder %s22, 1
      %p145 = scmp.ne.s32.totalorder %s140, %s142
      %p146 = scmp.eq.s32.totalorder %s22, 0
      %p147 = por %p145, %p146
      %p148 = scmp.ne.s32.totalorder %s140, %s142
      %p149 = scmp.eq.s32.totalorder %s27, 1
      %p150 = por %p148, %p149
      %p151 = scmp.ne.s32.totalorder %s142, %s143
      %p152 = scmp.eq.s32.totalorder %s27, 0
      %p153 = por %p151, %p152
      %p154 = scmp.ne.s32.totalorder %s142, %s143
      %p155 = scmp.eq.s32.totalorder %s28, 1
      %p156 = por %p154, %p155
      %p158 = scmp.ne.s32.totalorder %s143, %s157
      %p159 = scmp.eq.s32.totalorder %s28, 0
      %p160 = por %p158, %p159
      %s161 = ssub.s32 %s22, %s29
      %p162 = scmp.eq.s32.totalorder %s161, 0
      %s164 = sadd.s32 %s163, 1
      %s165 = scalar_select %p162, %s163, %s164
      %p168 = pneg %p162
      %p169 = scmp.eq.s32.totalorder %s22, 1
      %p170 = por %p168, %p169
      %p171 = scmp.ne.s32.totalorder %s163, %s166
      %p172 = scmp.eq.s32.totalorder %s22, 0
      %p173 = por %p171, %p172
      %p174 = scmp.ne.s32.totalorder %s163, %s166
      %p175 = scmp.eq.s32.totalorder %s27, 1
      %p176 = por %p174, %p175
      %p177 = scmp.ne.s32.totalorder %s166, %s167
      %p178 = scmp.eq.s32.totalorder %s27, 0
      %p179 = por %p177, %p178
      %p180 = scmp.ne.s32.totalorder %s166, %s167
      %p181 = scmp.eq.s32.totalorder %s28, 1
      %p182 = por %p180, %p181
      %p184 = scmp.ne.s32.totalorder %s167, %s183
      %p185 = scmp.eq.s32.totalorder %s28, 0
      %p186 = por %p184, %p185
      %s187 = ssub.s32 %s22, %s29
      %p188 = scmp.eq.s32.totalorder %s187, 0
      %s190 = sadd.s32 %s189, 1
      %s191 = scalar_select %p188, %s189, %s190
      %p194 = pneg %p188
      %p195 = scmp.eq.s32.totalorder %s22, 1
      %p196 = por %p194, %p195
      %p197 = scmp.ne.s32.totalorder %s189, %s192
      %p198 = scmp.eq.s32.totalorder %s22, 0
      %p199 = por %p197, %p198
      %p200 = scmp.ne.s32.totalorder %s189, %s192
      %p201 = scmp.eq.s32.totalorder %s27, 1
      %p202 = por %p200, %p201
      %p203 = scmp.ne.s32.totalorder %s192, %s193
      %p204 = scmp.eq.s32.totalorder %s27, 0
      %p205 = por %p203, %p204
      %p206 = scmp.ne.s32.totalorder %s192, %s193
      %p207 = scmp.eq.s32.totalorder %s28, 1
      %p208 = por %p206, %p207
      %p210 = scmp.ne.s32.totalorder %s193, %s209
      %p211 = scmp.eq.s32.totalorder %s28, 0
      %p212 = por %p210, %p211
      %s213 = ssub.s32 %s22, %s29
      %p214 = scmp.eq.s32.totalorder %s213, 0
      %s216 = sadd.s32 %s215, 1
      %s217 = scalar_select %p214, %s215, %s216
      %p220 = pneg %p214
      %p221 = scmp.eq.s32.totalorder %s22, 1
      %p222 = por %p220, %p221
      %p223 = scmp.ne.s32.totalorder %s215, %s218
      %p224 = scmp.eq.s32.totalorder %s22, 0
      %p225 = por %p223, %p224
      %p226 = scmp.ne.s32.totalorder %s215, %s218
      %p227 = scmp.eq.s32.totalorder %s27, 1
      %p228 = por %p226, %p227
      %p229 = scmp.ne.s32.totalorder %s218, %s219
      %p230 = scmp.eq.s32.totalorder %s27, 0
      %p231 = por %p229, %p230
      %p232 = scmp.ne.s32.totalorder %s218, %s219
      %p233 = scmp.eq.s32.totalorder %s28, 1
      %p234 = por %p232, %p233
      %p236 = scmp.ne.s32.totalorder %s219, %s235
      %p237 = scmp.eq.s32.totalorder %s28, 0
      %p238 = por %p236, %p237
      %p239 = scmp.le.s32.totalorder 1, %s22
      %p240 = scmp.lt.s32.totalorder %s22, 3
      %p241 = pnand %p239, %p240
      %p242 = pneg %p241
      // Predicated region
      $region9: #{tpu_custom_call.1} parent=5 // pred_check
        _
      $region10: #{tpu_custom_call.1} parent=5 // pred_check_branch
        %244 = sbr.rel (%p241) target = $region12
      $region11: #{tpu_custom_call.1} parent=5 // pred_region
        %s245 = ssub.s32 %s22, 1
        // Predicated region
        $region13: #{tpu_custom_call.1} parent=11 // pred_check
          %p246 = pneg %p69
        $region14: #{tpu_custom_call.1} parent=11 // pred_check_branch
          %248 = sbr.rel (%p246) target = $region16
        $region15: #{tpu_custom_call.1} parent=11 // pred_region
          _
        $region16: #{tpu_custom_call.1} parent=11 // pred_fallthru
          _
        // Predicated region
        $region17: #{tpu_custom_call.1} parent=11 // pred_check
          %p249 = pneg %p90
        $region18: #{tpu_custom_call.1} parent=11 // pred_check_branch
          %251 = sbr.rel (%p249) target = $region20
        $region19: #{tpu_custom_call.1} parent=11 // pred_region
          _
        $region20: #{tpu_custom_call.1} parent=11 // pred_fallthru
          _
        // Predicated region
        $region21: #{tpu_custom_call.1} parent=11 // pred_check
          %p252 = pneg %p111
        $region22: #{tpu_custom_call.1} parent=11 // pred_check_branch
          %254 = sbr.rel (%p252) target = $region24
        $region23: #{tpu_custom_call.1} parent=11 // pred_region
          _
        $region24: #{tpu_custom_call.1} parent=11 // pred_fallthru
          _
        // Predicated region
        $region25: #{tpu_custom_call.1} parent=11 // pred_check
          %p255 = pneg %p132
        $region26: #{tpu_custom_call.1} parent=11 // pred_check_branch
          %257 = sbr.rel (%p255) target = $region28
        $region27: #{tpu_custom_call.1} parent=11 // pred_region
          _
        $region28: #{tpu_custom_call.1} parent=11 // pred_fallthru
          _
        // Predicated region
        $region29: #{tpu_custom_call.1} parent=11 // pred_check
          %p258 = pneg %p153
        $region30: #{tpu_custom_call.1} parent=11 // pred_check_branch
          %260 = sbr.rel (%p258) target = $region32
        $region31: #{tpu_custom_call.1} parent=11 // pred_region
          _
        $region32: #{tpu_custom_call.1} parent=11 // pred_fallthru
          _
      $region12: #{tpu_custom_call.1} parent=5 // pred_fallthru
        _
      %p261 = scmp.lt.s32.totalorder %s22, 2
      // Predicated region
      $region33: #{tpu_custom_call.1} parent=5 // pred_check
        %p262 = pneg %p261
      $region34: #{tpu_custom_call.1} parent=5 // pred_check_branch
        %264 = sbr.rel (%p262) target = $region36
      $region35: #{tpu_custom_call.1} parent=5 // pred_region
        // Predicated region
        $region37: #{tpu_custom_call.1} parent=35 // pred_check
          %p265 = pneg %p42
        $region38: #{tpu_custom_call.1} parent=35 // pred_check_branch
          %267 = sbr.rel (%p265) target = $region40
        $region39: #{tpu_custom_call.1} parent=35 // pred_region
          %p268 = scmp.lt.s32.totalorder %s22, 1
          %s269 = scalar_select %p268, %s22, 1
          %s270 = smul.addr %s269, 64
          %s271 = smul.addr %s270, 8
          %s272 = scalar_lea.vmem %s0, %s271
        $region40: #{tpu_custom_call.1} parent=35 // pred_fallthru
          _
      $region36: #{tpu_custom_call.1} parent=5 // pred_fallthru
        _
      %p273 = scmp.le.s32.totalorder 1, %s22
      %p274 = scmp.lt.s32.totalorder %s22, 3
      %p275 = pnand %p273, %p274
      %p276 = pneg %p275
      // Predicated region
      $region41: #{tpu_custom_call.1} parent=5 // pred_check
        _
      $region42: #{tpu_custom_call.1} parent=5 // pred_check_branch
        %278 = sbr.rel (%p275) target = $region44
      $region43: #{tpu_custom_call.1} parent=5 // pred_region
        %s279 = ssub.s32 %s22, 1
        %p280 = scmp.lt.s32.totalorder %s27, 1
        %s281 = scalar_select %p280, %s27, 1
        %s282 = smul.addr %s281, 64
        %s283 = smul.addr %s282, 8
        %s284 = scalar_lea.vmem %s0, %s283
        %p285 = pneg %p48
        %p286 = pneg %p45
        %p287 = pneg %p69
        %p288 = pneg %p66
        %p289 = pneg %p90
        %p290 = pneg %p87
        %p291 = pneg %p111
        %p292 = pneg %p108
        %p293 = pneg %p132
        %p294 = pneg %p129
        %p295 = pneg %p153
        %p296 = pneg %p150
        %p297 = pneg %p179
        %p298 = pneg %p176
        %s299 = sand.u32 %s166, 1
        %s300 = scalar_lea.sflag [#allocation4], %s299
        %s301 = sand.u32 %s166, 1
        %s302 = smul.addr %s301, 2
        %s303 = scalar_lea.vmem [#allocation3], %s302
        %p304 = pneg %p205
        %p305 = pneg %p202
        %s306 = sand.u32 %s27, 1
        %s307 = scalar_lea.sflag [#allocation6], %s306
        %s308 = sand.u32 %s192, 1
        %s309 = smul.addr %s308, 4
        %s310 = scalar_lea.vmem [#allocation5], %s309
        %p311 = pneg %p231
        %p312 = pneg %p228
        %s313 = sand.u32 %s27, 1
        %s314 = scalar_lea.sflag [#allocation6], %s313
        %s315 = sand.u32 %s218, 1
        %s316 = smul.addr %s315, 4
        %s317 = scalar_lea.vmem [#allocation7], %s316
        %p318 = scmp.lt.s32.totalorder %s27, 1
        %s319 = scalar_select %p318, %s27, 1
        %s320 = smul.addr %s319, 64
        %s321 = smul.addr %s320, 8
        %s322 = scalar_lea.vmem %s0, %s321
        %v324 = vld [vmem:[%s322] sm:$0xff]
        %v325 = vld [vmem:[%s322 + $0x8] sm:$0xff]
        %v326 = vld [vmem:[%s322 + $0x10] sm:$0xff]
        %v327 = vld [vmem:[%s322 + $0x18] sm:$0xff]
        %v328 = vld [vmem:[%s322 + $0x20] sm:$0xff]
        %v329 = vld [vmem:[%s322 + $0x28] sm:$0xff]
        %v330 = vld [vmem:[%s322 + $0x30] sm:$0xff]
        %v331 = vld [vmem:[%s322 + $0x38] sm:$0xff]
        %v332 = vld [vmem:[%s322 + $0x40] sm:$0xff]
        %v333 = vld [vmem:[%s322 + $0x48] sm:$0xff]
        %v334 = vld [vmem:[%s322 + $0x50] sm:$0xff]
        %v335 = vld [vmem:[%s322 + $0x58] sm:$0xff]
        %v336 = vld [vmem:[%s322 + $0x60] sm:$0xff]
        %v337 = vld [vmem:[%s322 + $0x68] sm:$0xff]
        %v338 = vld [vmem:[%s322 + $0x70] sm:$0xff]
        %v339 = vld [vmem:[%s322 + $0x78] sm:$0xff]
        %v340 = vld [vmem:[%s322 + $0x80] sm:$0xff]
        %v341 = vld [vmem:[%s322 + $0x88] sm:$0xff]
        %v342 = vld [vmem:[%s322 + $0x90] sm:$0xff]
        %v343 = vld [vmem:[%s322 + $0x98] sm:$0xff]
        %v344 = vld [vmem:[%s322 + $0xa0] sm:$0xff]
        %v345 = vld [vmem:[%s322 + $0xa8] sm:$0xff]
        %v346 = vld [vmem:[%s322 + $0xb0] sm:$0xff]
        %v347 = vld [vmem:[%s322 + $0xb8] sm:$0xff]
        %v348 = vld [vmem:[%s322 + $0xc0] sm:$0xff]
        %v349 = vld [vmem:[%s322 + $0xc8] sm:$0xff]
        %v350 = vld [vmem:[%s322 + $0xd0] sm:$0xff]
        %v351 = vld [vmem:[%s322 + $0xd8] sm:$0xff]
        %v352 = vld [vmem:[%s322 + $0xe0] sm:$0xff]
        %v353 = vld [vmem:[%s322 + $0xe8] sm:$0xff]
        %v354 = vld [vmem:[%s322 + $0xf0] sm:$0xff]
        %v355 = vld [vmem:[%s322 + $0xf8] sm:$0xff]
        %v356 = vld [vmem:[%s322 + $0x100] sm:$0xff]
        %v357 = vld [vmem:[%s322 + $0x108] sm:$0xff]
        %v358 = vld [vmem:[%s322 + $0x110] sm:$0xff]
        %v359 = vld [vmem:[%s322 + $0x118] sm:$0xff]
        %v360 = vld [vmem:[%s322 + $0x120] sm:$0xff]
        %v361 = vld [vmem:[%s322 + $0x128] sm:$0xff]
        %v362 = vld [vmem:[%s322 + $0x130] sm:$0xff]
        %v363 = vld [vmem:[%s322 + $0x138] sm:$0xff]
        %v364 = vld [vmem:[%s322 + $0x140] sm:$0xff]
        %v365 = vld [vmem:[%s322 + $0x148] sm:$0xff]
        %v366 = vld [vmem:[%s322 + $0x150] sm:$0xff]
        %v367 = vld [vmem:[%s322 + $0x158] sm:$0xff]
        %v368 = vld [vmem:[%s322 + $0x160] sm:$0xff]
        %v369 = vld [vmem:[%s322 + $0x168] sm:$0xff]
        %v370 = vld [vmem:[%s322 + $0x170] sm:$0xff]
        %v371 = vld [vmem:[%s322 + $0x178] sm:$0xff]
        %v372 = vld [vmem:[%s322 + $0x180] sm:$0xff]
        %v373 = vld [vmem:[%s322 + $0x188] sm:$0xff]
        %v374 = vld [vmem:[%s322 + $0x190] sm:$0xff]
        %v375 = vld [vmem:[%s322 + $0x198] sm:$0xff]
        %v376 = vld [vmem:[%s322 + $0x1a0] sm:$0xff]
        %v377 = vld [vmem:[%s322 + $0x1a8] sm:$0xff]
        %v378 = vld [vmem:[%s322 + $0x1b0] sm:$0xff]
        %v379 = vld [vmem:[%s322 + $0x1b8] sm:$0xff]
        %v380 = vld [vmem:[%s322 + $0x1c0] sm:$0xff]
        %v381 = vld [vmem:[%s322 + $0x1c8] sm:$0xff]
        %v382 = vld [vmem:[%s322 + $0x1d0] sm:$0xff]
        %v383 = vld [vmem:[%s322 + $0x1d8] sm:$0xff]
        %v384 = vld [vmem:[%s322 + $0x1e0] sm:$0xff]
        %v385 = vld [vmem:[%s322 + $0x1e8] sm:$0xff]
        %v386 = vld [vmem:[%s322 + $0x1f0] sm:$0xff]
        %v387 = vld [vmem:[%s322 + $0x1f8] sm:$0xff]
        %v388 = vmax.f32 %v324, 1e-06
        %v389 = vmax.f32 %v325, 1e-06
        %v390 = vmax.f32 %v326, 1e-06
        %v391 = vmax.f32 %v327, 1e-06
        %v392 = vmax.f32 %v328, 1e-06
        %v393 = vmax.f32 %v329, 1e-06
        %v394 = vmax.f32 %v330, 1e-06
        %v395 = vmax.f32 %v331, 1e-06
        %v396 = vmax.f32 %v332, 1e-06
        %v397 = vmax.f32 %v333, 1e-06
        %v398 = vmax.f32 %v334, 1e-06
        %v399 = vmax.f32 %v335, 1e-06
        %v400 = vmax.f32 %v336, 1e-06
        %v401 = vmax.f32 %v337, 1e-06
        %v402 = vmax.f32 %v338, 1e-06
        %v403 = vmax.f32 %v339, 1e-06
        %v404 = vmax.f32 %v340, 1e-06
        %v405 = vmax.f32 %v341, 1e-06
        %v406 = vmax.f32 %v342, 1e-06
        %v407 = vmax.f32 %v343, 1e-06
        %v408 = vmax.f32 %v344, 1e-06
        %v409 = vmax.f32 %v345, 1e-06
        %v410 = vmax.f32 %v346, 1e-06
        %v411 = vmax.f32 %v347, 1e-06
        %v412 = vmax.f32 %v348, 1e-06
        %v413 = vmax.f32 %v349, 1e-06
        %v414 = vmax.f32 %v350, 1e-06
        %v415 = vmax.f32 %v351, 1e-06
        %v416 = vmax.f32 %v352, 1e-06
        %v417 = vmax.f32 %v353, 1e-06
        %v418 = vmax.f32 %v354, 1e-06
        %v419 = vmax.f32 %v355, 1e-06
        %v420 = vmax.f32 %v356, 1e-06
        %v421 = vmax.f32 %v357, 1e-06
        %v422 = vmax.f32 %v358, 1e-06
        %v423 = vmax.f32 %v359, 1e-06
        %v424 = vmax.f32 %v360, 1e-06
        %v425 = vmax.f32 %v361, 1e-06
        %v426 = vmax.f32 %v362, 1e-06
        %v427 = vmax.f32 %v363, 1e-06
        %v428 = vmax.f32 %v364, 1e-06
        %v429 = vmax.f32 %v365, 1e-06
        %v430 = vmax.f32 %v366, 1e-06
        %v431 = vmax.f32 %v367, 1e-06
        %v432 = vmax.f32 %v368, 1e-06
        %v433 = vmax.f32 %v369, 1e-06
        %v434 = vmax.f32 %v370, 1e-06
        %v435 = vmax.f32 %v371, 1e-06
        %v436 = vmax.f32 %v372, 1e-06
        %v437 = vmax.f32 %v373, 1e-06
        %v438 = vmax.f32 %v374, 1e-06
        %v439 = vmax.f32 %v375, 1e-06
        %v440 = vmax.f32 %v376, 1e-06
        %v441 = vmax.f32 %v377, 1e-06
        %v442 = vmax.f32 %v378, 1e-06
        %v443 = vmax.f32 %v379, 1e-06
        %v444 = vmax.f32 %v380, 1e-06
        %v445 = vmax.f32 %v381, 1e-06
        %v446 = vmax.f32 %v382, 1e-06
        %v447 = vmax.f32 %v383, 1e-06
        %v448 = vmax.f32 %v384, 1e-06
        %v449 = vmax.f32 %v385, 1e-06
        %v450 = vmax.f32 %v386, 1e-06
        %v451 = vmax.f32 %v387, 1e-06
        %v452 = vmul.f32 %v388, %v388
        %v453 = vmul.f32 %v389, %v389
        %v454 = vmul.f32 %v390, %v390
        %v455 = vmul.f32 %v391, %v391
        %v456 = vmul.f32 %v392, %v392
        %v457 = vmul.f32 %v393, %v393
        %v458 = vmul.f32 %v394, %v394
        %v459 = vmul.f32 %v395, %v395
        %v460 = vmul.f32 %v396, %v396
        %v461 = vmul.f32 %v397, %v397
        %v462 = vmul.f32 %v398, %v398
        %v463 = vmul.f32 %v399, %v399
        %v464 = vmul.f32 %v400, %v400
        %v465 = vmul.f32 %v401, %v401
        %v466 = vmul.f32 %v402, %v402
        %v467 = vmul.f32 %v403, %v403
        %v468 = vmul.f32 %v404, %v404
        %v469 = vmul.f32 %v405, %v405
        %v470 = vmul.f32 %v406, %v406
        %v471 = vmul.f32 %v407, %v407
        %v472 = vmul.f32 %v408, %v408
        %v473 = vmul.f32 %v409, %v409
        %v474 = vmul.f32 %v410, %v410
        %v475 = vmul.f32 %v411, %v411
        %v476 = vmul.f32 %v412, %v412
        %v477 = vmul.f32 %v413, %v413
        %v478 = vmul.f32 %v414, %v414
        %v479 = vmul.f32 %v415, %v415
        %v480 = vmul.f32 %v416, %v416
        %v481 = vmul.f32 %v417, %v417
        %v482 = vmul.f32 %v418, %v418
        %v483 = vmul.f32 %v419, %v419
        %v484 = vmul.f32 %v420, %v420
        %v485 = vmul.f32 %v421, %v421
        %v486 = vmul.f32 %v422, %v422
        %v487 = vmul.f32 %v423, %v423
        %v488 = vmul.f32 %v424, %v424
        %v489 = vmul.f32 %v425, %v425
        %v490 = vmul.f32 %v426, %v426
        %v491 = vmul.f32 %v427, %v427
        %v492 = vmul.f32 %v428, %v428
        %v493 = vmul.f32 %v429, %v429
        %v494 = vmul.f32 %v430, %v430
        %v495 = vmul.f32 %v431, %v431
        %v496 = vmul.f32 %v432, %v432
        %v497 = vmul.f32 %v433, %v433
        %v498 = vmul.f32 %v434, %v434
        %v499 = vmul.f32 %v435, %v435
        %v500 = vmul.f32 %v436, %v436
        %v501 = vmul.f32 %v437, %v437
        %v502 = vmul.f32 %v438, %v438
        %v503 = vmul.f32 %v439, %v439
        %v504 = vmul.f32 %v440, %v440
        %v505 = vmul.f32 %v441, %v441
        %v506 = vmul.f32 %v442, %v442
        %v507 = vmul.f32 %v443, %v443
        %v508 = vmul.f32 %v444, %v444
        %v509 = vmul.f32 %v445, %v445
        %v510 = vmul.f32 %v446, %v446
        %v511 = vmul.f32 %v447, %v447
        %v512 = vmul.f32 %v448, %v448
        %v513 = vmul.f32 %v449, %v449
        %v514 = vmul.f32 %v450, %v450
        %v515 = vmul.f32 %v451, %v451
        %v516 = vmul.f32 %v452, %v388
        %v517 = vmul.f32 %v453, %v389
        %v518 = vmul.f32 %v454, %v390
        %v519 = vmul.f32 %v455, %v391
        %v520 = vmul.f32 %v456, %v392
        %v521 = vmul.f32 %v457, %v393
        %v522 = vmul.f32 %v458, %v394
        %v523 = vmul.f32 %v459, %v395
        %v524 = vmul.f32 %v460, %v396
        %v525 = vmul.f32 %v461, %v397
        %v526 = vmul.f32 %v462, %v398
        %v527 = vmul.f32 %v463, %v399
        %v528 = vmul.f32 %v464, %v400
        %v529 = vmul.f32 %v465, %v401
        %v530 = vmul.f32 %v466, %v402
        %v531 = vmul.f32 %v467, %v403
        %v532 = vmul.f32 %v468, %v404
        %v533 = vmul.f32 %v469, %v405
        %v534 = vmul.f32 %v470, %v406
        %v535 = vmul.f32 %v471, %v407
        %v536 = vmul.f32 %v472, %v408
        %v537 = vmul.f32 %v473, %v409
        %v538 = vmul.f32 %v474, %v410
        %v539 = vmul.f32 %v475, %v411
        %v540 = vmul.f32 %v476, %v412
        %v541 = vmul.f32 %v477, %v413
        %v542 = vmul.f32 %v478, %v414
        %v543 = vmul.f32 %v479, %v415
        %v544 = vmul.f32 %v480, %v416
        %v545 = vmul.f32 %v481, %v417
        %v546 = vmul.f32 %v482, %v418
        %v547 = vmul.f32 %v483, %v419
        %v548 = vmul.f32 %v484, %v420
        %v549 = vmul.f32 %v485, %v421
        %v550 = vmul.f32 %v486, %v422
        %v551 = vmul.f32 %v487, %v423
        %v552 = vmul.f32 %v488, %v424
        %v553 = vmul.f32 %v489, %v425
        %v554 = vmul.f32 %v490, %v426
        %v555 = vmul.f32 %v491, %v427
        %v556 = vmul.f32 %v492, %v428
        %v557 = vmul.f32 %v493, %v429
        %v558 = vmul.f32 %v494, %v430
        %v559 = vmul.f32 %v495, %v431
        %v560 = vmul.f32 %v496, %v432
        %v561 = vmul.f32 %v497, %v433
        %v562 = vmul.f32 %v498, %v434
        %v563 = vmul.f32 %v499, %v435
        %v564 = vmul.f32 %v500, %v436
        %v565 = vmul.f32 %v501, %v437
        %v566 = vmul.f32 %v502, %v438
        %v567 = vmul.f32 %v503, %v439
        %v568 = vmul.f32 %v504, %v440
        %v569 = vmul.f32 %v505, %v441
        %v570 = vmul.f32 %v506, %v442
        %v571 = vmul.f32 %v507, %v443
        %v572 = vmul.f32 %v508, %v444
        %v573 = vmul.f32 %v509, %v445
        %v574 = vmul.f32 %v510, %v446
        %v575 = vmul.f32 %v511, %v447
        %v576 = vmul.f32 %v512, %v448
        %v577 = vmul.f32 %v513, %v449
        %v578 = vmul.f32 %v514, %v450
        %v579 = vmul.f32 %v515, %v451
        %vm580 = vcmask 64544
        %v581 = vsel %vm580, %v516, 0.0
        %v582 = vsel %vm580, %v517, 0.0
        %v583 = vadd.f32 %v581, %v582
        %v584 = vrot.slane %v583, 4
        %v585 = vadd.f32 %v583, %v584
        %v586 = vrot.slane %v585, 2
        %v587 = vadd.f32 %v585, %v586
        %v588 = vrot.slane %v587, 1
        %v589 = vadd.f32 %v587, %v588
        %v590 = vsel %vm580, %v518, 0.0
        %v591 = vsel %vm580, %v519, 0.0
        %v592 = vadd.f32 %v590, %v591
        %v593 = vrot.slane %v592, 4
        %v594 = vadd.f32 %v592, %v593
        %v595 = vrot.slane %v594, 2
        %v596 = vadd.f32 %v594, %v595
        %v597 = vrot.slane %v596, 1
        %v598 = vadd.f32 %v596, %v597
        %v599 = vsel %vm580, %v520, 0.0
        %v600 = vsel %vm580, %v521, 0.0
        %v601 = vadd.f32 %v599, %v600
        %v602 = vrot.slane %v601, 4
        %v603 = vadd.f32 %v601, %v602
        %v604 = vrot.slane %v603, 2
        %v605 = vadd.f32 %v603, %v604
        %v606 = vrot.slane %v605, 1
        %v607 = vadd.f32 %v605, %v606
        %v608 = vsel %vm580, %v522, 0.0
        %v609 = vsel %vm580, %v523, 0.0
        %v610 = vadd.f32 %v608, %v609
        %v611 = vrot.slane %v610, 4
        %v612 = vadd.f32 %v610, %v611
        %v613 = vrot.slane %v612, 2
        %v614 = vadd.f32 %v612, %v613
        %v615 = vrot.slane %v614, 1
        %v616 = vadd.f32 %v614, %v615
        %v617 = vsel %vm580, %v524, 0.0
        %v618 = vsel %vm580, %v525, 0.0
        %v619 = vadd.f32 %v617, %v618
        %v620 = vrot.slane %v619, 4
        %v621 = vadd.f32 %v619, %v620
        %v622 = vrot.slane %v621, 2
        %v623 = vadd.f32 %v621, %v622
        %v624 = vrot.slane %v623, 1
        %v625 = vadd.f32 %v623, %v624
        %v626 = vsel %vm580, %v526, 0.0
        %v627 = vsel %vm580, %v527, 0.0
        %v628 = vadd.f32 %v626, %v627
        %v629 = vrot.slane %v628, 4
        %v630 = vadd.f32 %v628, %v629
        %v631 = vrot.slane %v630, 2
        %v632 = vadd.f32 %v630, %v631
        %v633 = vrot.slane %v632, 1
        %v634 = vadd.f32 %v632, %v633
        %v635 = vsel %vm580, %v528, 0.0
        %v636 = vsel %vm580, %v529, 0.0
        %v637 = vadd.f32 %v635, %v636
        %v638 = vrot.slane %v637, 4
        %v639 = vadd.f32 %v637, %v638
        %v640 = vrot.slane %v639, 2
        %v641 = vadd.f32 %v639, %v640
        %v642 = vrot.slane %v641, 1
        %v643 = vadd.f32 %v641, %v642
        %v644 = vsel %vm580, %v530, 0.0
        %v645 = vsel %vm580, %v531, 0.0
        %v646 = vadd.f32 %v644, %v645
        %v647 = vrot.slane %v646, 4
        %v648 = vadd.f32 %v646, %v647
        %v649 = vrot.slane %v648, 2
        %v650 = vadd.f32 %v648, %v649
        %v651 = vrot.slane %v650, 1
        %v652 = vadd.f32 %v650, %v651
        %v653 = vsel %vm580, %v532, 0.0
        %v654 = vsel %vm580, %v533, 0.0
        %v655 = vadd.f32 %v653, %v654
        %v656 = vrot.slane %v655, 4
        %v657 = vadd.f32 %v655, %v656
        %v658 = vrot.slane %v657, 2
        %v659 = vadd.f32 %v657, %v658
        %v660 = vrot.slane %v659, 1
        %v661 = vadd.f32 %v659, %v660
        %v662 = vsel %vm580, %v534, 0.0
        %v663 = vsel %vm580, %v535, 0.0
        %v664 = vadd.f32 %v662, %v663
        %v665 = vrot.slane %v664, 4
        %v666 = vadd.f32 %v664, %v665
        %v667 = vrot.slane %v666, 2
        %v668 = vadd.f32 %v666, %v667
        %v669 = vrot.slane %v668, 1
        %v670 = vadd.f32 %v668, %v669
        %v671 = vsel %vm580, %v536, 0.0
        %v672 = vsel %vm580, %v537, 0.0
        %v673 = vadd.f32 %v671, %v672
        %v674 = vrot.slane %v673, 4
        %v675 = vadd.f32 %v673, %v674
        %v676 = vrot.slane %v675, 2
        %v677 = vadd.f32 %v675, %v676
        %v678 = vrot.slane %v677, 1
        %v679 = vadd.f32 %v677, %v678
        %v680 = vsel %vm580, %v538, 0.0
        %v681 = vsel %vm580, %v539, 0.0
        %v682 = vadd.f32 %v680, %v681
        %v683 = vrot.slane %v682, 4
        %v684 = vadd.f32 %v682, %v683
        %v685 = vrot.slane %v684, 2
        %v686 = vadd.f32 %v684, %v685
        %v687 = vrot.slane %v686, 1
        %v688 = vadd.f32 %v686, %v687
        %v689 = vsel %vm580, %v540, 0.0
        %v690 = vsel %vm580, %v541, 0.0
        %v691 = vadd.f32 %v689, %v690
        %v692 = vrot.slane %v691, 4
        %v693 = vadd.f32 %v691, %v692
        %v694 = vrot.slane %v693, 2
        %v695 = vadd.f32 %v693, %v694
        %v696 = vrot.slane %v695, 1
        %v697 = vadd.f32 %v695, %v696
        %v698 = vsel %vm580, %v542, 0.0
        %v699 = vsel %vm580, %v543, 0.0
        %v700 = vadd.f32 %v698, %v699
        %v701 = vrot.slane %v700, 4
        %v702 = vadd.f32 %v700, %v701
        %v703 = vrot.slane %v702, 2
        %v704 = vadd.f32 %v702, %v703
        %v705 = vrot.slane %v704, 1
        %v706 = vadd.f32 %v704, %v705
        %v707 = vsel %vm580, %v544, 0.0
        %v708 = vsel %vm580, %v545, 0.0
        %v709 = vadd.f32 %v707, %v708
        %v710 = vrot.slane %v709, 4
        %v711 = vadd.f32 %v709, %v710
        %v712 = vrot.slane %v711, 2
        %v713 = vadd.f32 %v711, %v712
        %v714 = vrot.slane %v713, 1
        %v715 = vadd.f32 %v713, %v714
        %v716 = vsel %vm580, %v546, 0.0
        %v717 = vsel %vm580, %v547, 0.0
        %v718 = vadd.f32 %v716, %v717
        %v719 = vrot.slane %v718, 4
        %v720 = vadd.f32 %v718, %v719
        %v721 = vrot.slane %v720, 2
        %v722 = vadd.f32 %v720, %v721
        %v723 = vrot.slane %v722, 1
        %v724 = vadd.f32 %v722, %v723
        %v725 = vsel %vm580, %v548, 0.0
        %v726 = vsel %vm580, %v549, 0.0
        %v727 = vadd.f32 %v725, %v726
        %v728 = vrot.slane %v727, 4
        %v729 = vadd.f32 %v727, %v728
        %v730 = vrot.slane %v729, 2
        %v731 = vadd.f32 %v729, %v730
        %v732 = vrot.slane %v731, 1
        %v733 = vadd.f32 %v731, %v732
        %v734 = vsel %vm580, %v550, 0.0
        %v735 = vsel %vm580, %v551, 0.0
        %v736 = vadd.f32 %v734, %v735
        %v737 = vrot.slane %v736, 4
        %v738 = vadd.f32 %v736, %v737
        %v739 = vrot.slane %v738, 2
        %v740 = vadd.f32 %v738, %v739
        %v741 = vrot.slane %v740, 1
        %v742 = vadd.f32 %v740, %v741
        %v743 = vsel %vm580, %v552, 0.0
        %v744 = vsel %vm580, %v553, 0.0
        %v745 = vadd.f32 %v743, %v744
        %v746 = vrot.slane %v745, 4
        %v747 = vadd.f32 %v745, %v746
        %v748 = vrot.slane %v747, 2
        %v749 = vadd.f32 %v747, %v748
        %v750 = vrot.slane %v749, 1
        %v751 = vadd.f32 %v749, %v750
        %v752 = vsel %vm580, %v554, 0.0
        %v753 = vsel %vm580, %v555, 0.0
        %v754 = vadd.f32 %v752, %v753
        %v755 = vrot.slane %v754, 4
        %v756 = vadd.f32 %v754, %v755
        %v757 = vrot.slane %v756, 2
        %v758 = vadd.f32 %v756, %v757
        %v759 = vrot.slane %v758, 1
        %v760 = vadd.f32 %v758, %v759
        %v761 = vsel %vm580, %v556, 0.0
        %v762 = vsel %vm580, %v557, 0.0
        %v763 = vadd.f32 %v761, %v762
        %v764 = vrot.slane %v763, 4
        %v765 = vadd.f32 %v763, %v764
        %v766 = vrot.slane %v765, 2
        %v767 = vadd.f32 %v765, %v766
        %v768 = vrot.slane %v767, 1
        %v769 = vadd.f32 %v767, %v768
        %v770 = vsel %vm580, %v558, 0.0
        %v771 = vsel %vm580, %v559, 0.0
        %v772 = vadd.f32 %v770, %v771
        %v773 = vrot.slane %v772, 4
        %v774 = vadd.f32 %v772, %v773
        %v775 = vrot.slane %v774, 2
        %v776 = vadd.f32 %v774, %v775
        %v777 = vrot.slane %v776, 1
        %v778 = vadd.f32 %v776, %v777
        %v779 = vsel %vm580, %v560, 0.0
        %v780 = vsel %vm580, %v561, 0.0
        %v781 = vadd.f32 %v779, %v780
        %v782 = vrot.slane %v781, 4
        %v783 = vadd.f32 %v781, %v782
        %v784 = vrot.slane %v783, 2
        %v785 = vadd.f32 %v783, %v784
        %v786 = vrot.slane %v785, 1
        %v787 = vadd.f32 %v785, %v786
        %v788 = vsel %vm580, %v562, 0.0
        %v789 = vsel %vm580, %v563, 0.0
        %v790 = vadd.f32 %v788, %v789
        %v791 = vrot.slane %v790, 4
        %v792 = vadd.f32 %v790, %v791
        %v793 = vrot.slane %v792, 2
        %v794 = vadd.f32 %v792, %v793
        %v795 = vrot.slane %v794, 1
        %v796 = vadd.f32 %v794, %v795
        %v797 = vsel %vm580, %v564, 0.0
        %v798 = vsel %vm580, %v565, 0.0
        %v799 = vadd.f32 %v797, %v798
        %v800 = vrot.slane %v799, 4
        %v801 = vadd.f32 %v799, %v800
        %v802 = vrot.slane %v801, 2
        %v803 = vadd.f32 %v801, %v802
        %v804 = vrot.slane %v803, 1
        %v805 = vadd.f32 %v803, %v804
        %v806 = vsel %vm580, %v566, 0.0
        %v807 = vsel %vm580, %v567, 0.0
        %v808 = vadd.f32 %v806, %v807
        %v809 = vrot.slane %v808, 4
        %v810 = vadd.f32 %v808, %v809
        %v811 = vrot.slane %v810, 2
        %v812 = vadd.f32 %v810, %v811
        %v813 = vrot.slane %v812, 1
        %v814 = vadd.f32 %v812, %v813
        %v815 = vsel %vm580, %v568, 0.0
        %v816 = vsel %vm580, %v569, 0.0
        %v817 = vadd.f32 %v815, %v816
        %v818 = vrot.slane %v817, 4
        %v819 = vadd.f32 %v817, %v818
        %v820 = vrot.slane %v819, 2
        %v821 = vadd.f32 %v819, %v820
        %v822 = vrot.slane %v821, 1
        %v823 = vadd.f32 %v821, %v822
        %v824 = vsel %vm580, %v570, 0.0
        %v825 = vsel %vm580, %v571, 0.0
        %v826 = vadd.f32 %v824, %v825
        %v827 = vrot.slane %v826, 4
        %v828 = vadd.f32 %v826, %v827
        %v829 = vrot.slane %v828, 2
        %v830 = vadd.f32 %v828, %v829
        %v831 = vrot.slane %v830, 1
        %v832 = vadd.f32 %v830, %v831
        %v833 = vsel %vm580, %v572, 0.0
        %v834 = vsel %vm580, %v573, 0.0
        %v835 = vadd.f32 %v833, %v834
        %v836 = vrot.slane %v835, 4
        %v837 = vadd.f32 %v835, %v836
        %v838 = vrot.slane %v837, 2
        %v839 = vadd.f32 %v837, %v838
        %v840 = vrot.slane %v839, 1
        %v841 = vadd.f32 %v839, %v840
        %v842 = vsel %vm580, %v574, 0.0
        %v843 = vsel %vm580, %v575, 0.0
        %v844 = vadd.f32 %v842, %v843
        %v845 = vrot.slane %v844, 4
        %v846 = vadd.f32 %v844, %v845
        %v847 = vrot.slane %v846, 2
        %v848 = vadd.f32 %v846, %v847
        %v849 = vrot.slane %v848, 1
        %v850 = vadd.f32 %v848, %v849
        %v851 = vsel %vm580, %v576, 0.0
        %v852 = vsel %vm580, %v577, 0.0
        %v853 = vadd.f32 %v851, %v852
        %v854 = vrot.slane %v853, 4
        %v855 = vadd.f32 %v853, %v854
        %v856 = vrot.slane %v855, 2
        %v857 = vadd.f32 %v855, %v856
        %v858 = vrot.slane %v857, 1
        %v859 = vadd.f32 %v857, %v858
        %v860 = vsel %vm580, %v578, 0.0
        %v861 = vsel %vm580, %v579, 0.0
        %v862 = vadd.f32 %v860, %v861
        %v863 = vrot.slane %v862, 4
        %v864 = vadd.f32 %v862, %v863
        %v865 = vrot.slane %v864, 2
        %v866 = vadd.f32 %v864, %v865
        %v867 = vrot.slane %v866, 1
        %v868 = vadd.f32 %v866, %v867
        %v869 = vrcp.pop 16.0
        %v870 = vmul.f32 16.0, %v869
        %v871 = vsub.f32 1.0, %v870
        %v872 = vmul.f32 %v869, %v871
        %v873 = vadd.f32 %v869, %v872
        %vm874 = vweird.f32 %v869
        %v875 = vsel %vm874, %v869, %v873
        %v876 = vmul.f32 %v589, %v875
        %v877 = vmul.f32 %v598, %v875
        %v878 = vmul.f32 %v607, %v875
        %v879 = vmul.f32 %v616, %v875
        %v880 = vmul.f32 %v625, %v875
        %v881 = vmul.f32 %v634, %v875
        %v882 = vmul.f32 %v643, %v875
        %v883 = vmul.f32 %v652, %v875
        %v884 = vmul.f32 %v661, %v875
        %v885 = vmul.f32 %v670, %v875
        %v886 = vmul.f32 %v679, %v875
        %v887 = vmul.f32 %v688, %v875
        %v888 = vmul.f32 %v697, %v875
        %v889 = vmul.f32 %v706, %v875
        %v890 = vmul.f32 %v715, %v875
        %v891 = vmul.f32 %v724, %v875
        %v892 = vmul.f32 %v733, %v875
        %v893 = vmul.f32 %v742, %v875
        %v894 = vmul.f32 %v751, %v875
        %v895 = vmul.f32 %v760, %v875
        %v896 = vmul.f32 %v769, %v875
        %v897 = vmul.f32 %v778, %v875
        %v898 = vmul.f32 %v787, %v875
        %v899 = vmul.f32 %v796, %v875
        %v900 = vmul.f32 %v805, %v875
        %v901 = vmul.f32 %v814, %v875
        %v902 = vmul.f32 %v823, %v875
        %v903 = vmul.f32 %v832, %v875
        %v904 = vmul.f32 %v841, %v875
        %v905 = vmul.f32 %v850, %v875
        %v906 = vmul.f32 %v859, %v875
        %v907 = vmul.f32 %v868, %v875
        %v908 = vlog2.pop %v876
        %v909 = vmul.f32 %v908, 0.6931472
        %v910 = vlog2.pop %v877
        %v911 = vmul.f32 %v910, 0.6931472
        %v912 = vlog2.pop %v878
        %v913 = vmul.f32 %v912, 0.6931472
        %v914 = vlog2.pop %v879
        %v915 = vmul.f32 %v914, 0.6931472
        %v916 = vlog2.pop %v880
        %v917 = vmul.f32 %v916, 0.6931472
        %v918 = vlog2.pop %v881
        %v919 = vmul.f32 %v918, 0.6931472
        %v920 = vlog2.pop %v882
        %v921 = vmul.f32 %v920, 0.6931472
        %v922 = vlog2.pop %v883
        %v923 = vmul.f32 %v922, 0.6931472
        %v924 = vlog2.pop %v884
        %v925 = vmul.f32 %v924, 0.6931472
        %v926 = vlog2.pop %v885
        %v927 = vmul.f32 %v926, 0.6931472
        %v928 = vlog2.pop %v886
        %v929 = vmul.f32 %v928, 0.6931472
        %v930 = vlog2.pop %v887
        %v931 = vmul.f32 %v930, 0.6931472
        %v932 = vlog2.pop %v888
        %v933 = vmul.f32 %v932, 0.6931472
        %v934 = vlog2.pop %v889
        %v935 = vmul.f32 %v934, 0.6931472
        %v936 = vlog2.pop %v890
        %v937 = vmul.f32 %v936, 0.6931472
        %v938 = vlog2.pop %v891
        %v939 = vmul.f32 %v938, 0.6931472
        %v940 = vlog2.pop %v892
        %v941 = vmul.f32 %v940, 0.6931472
        %v942 = vlog2.pop %v893
        %v943 = vmul.f32 %v942, 0.6931472
        %v944 = vlog2.pop %v894
        %v945 = vmul.f32 %v944, 0.6931472
        %v946 = vlog2.pop %v895
        %v947 = vmul.f32 %v946, 0.6931472
        %v948 = vlog2.pop %v896
        %v949 = vmul.f32 %v948, 0.6931472
        %v950 = vlog2.pop %v897
        %v951 = vmul.f32 %v950, 0.6931472
        %v952 = vlog2.pop %v898
        %v953 = vmul.f32 %v952, 0.6931472
        %v954 = vlog2.pop %v899
        %v955 = vmul.f32 %v954, 0.6931472
        %v956 = vlog2.pop %v900
        %v957 = vmul.f32 %v956, 0.6931472
        %v958 = vlog2.pop %v901
        %v959 = vmul.f32 %v958, 0.6931472
        %v960 = vlog2.pop %v902
        %v961 = vmul.f32 %v960, 0.6931472
        %v962 = vlog2.pop %v903
        %v963 = vmul.f32 %v962, 0.6931472
        %v964 = vlog2.pop %v904
        %v965 = vmul.f32 %v964, 0.6931472
        %v966 = vlog2.pop %v905
        %v967 = vmul.f32 %v966, 0.6931472
        %v968 = vlog2.pop %v906
        %v969 = vmul.f32 %v968, 0.6931472
        %v970 = vlog2.pop %v907
        %v971 = vmul.f32 %v970, 0.6931472
        %v972 = vmul.f32 %v909, 0.33333334
        %v973 = vmul.f32 %v911, 0.33333334
        %v974 = vmul.f32 %v913, 0.33333334
        %v975 = vmul.f32 %v915, 0.33333334
        %v976 = vmul.f32 %v917, 0.33333334
        %v977 = vmul.f32 %v919, 0.33333334
        %v978 = vmul.f32 %v921, 0.33333334
        %v979 = vmul.f32 %v923, 0.33333334
        %v980 = vmul.f32 %v925, 0.33333334
        %v981 = vmul.f32 %v927, 0.33333334
        %v982 = vmul.f32 %v929, 0.33333334
        %v983 = vmul.f32 %v931, 0.33333334
        %v984 = vmul.f32 %v933, 0.33333334
        %v985 = vmul.f32 %v935, 0.33333334
        %v986 = vmul.f32 %v937, 0.33333334
        %v987 = vmul.f32 %v939, 0.33333334
        %v988 = vmul.f32 %v941, 0.33333334
        %v989 = vmul.f32 %v943, 0.33333334
        %v990 = vmul.f32 %v945, 0.33333334
        %v991 = vmul.f32 %v947, 0.33333334
        %v992 = vmul.f32 %v949, 0.33333334
        %v993 = vmul.f32 %v951, 0.33333334
        %v994 = vmul.f32 %v953, 0.33333334
        %v995 = vmul.f32 %v955, 0.33333334
        %v996 = vmul.f32 %v957, 0.33333334
        %v997 = vmul.f32 %v959, 0.33333334
        %v998 = vmul.f32 %v961, 0.33333334
        %v999 = vmul.f32 %v963, 0.33333334
        %v1000 = vmul.f32 %v965, 0.33333334
        %v1001 = vmul.f32 %v967, 0.33333334
        %v1002 = vmul.f32 %v969, 0.33333334
        %v1003 = vmul.f32 %v971, 0.33333334
        %v1004 = vmul.f32 %v972, 1.442695
        %v1005 = vpow.pop %v1004
        %v1006 = vmul.f32 %v973, 1.442695
        %v1007 = vpow.pop %v1006
        %v1008 = vmul.f32 %v974, 1.442695
        %v1009 = vpow.pop %v1008
        %v1010 = vmul.f32 %v975, 1.442695
        %v1011 = vpow.pop %v1010
        %v1012 = vmul.f32 %v976, 1.442695
        %v1013 = vpow.pop %v1012
        %v1014 = vmul.f32 %v977, 1.442695
        %v1015 = vpow.pop %v1014
        %v1016 = vmul.f32 %v978, 1.442695
        %v1017 = vpow.pop %v1016
        %v1018 = vmul.f32 %v979, 1.442695
        %v1019 = vpow.pop %v1018
        %v1020 = vmul.f32 %v980, 1.442695
        %v1021 = vpow.pop %v1020
        %v1022 = vmul.f32 %v981, 1.442695
        %v1023 = vpow.pop %v1022
        %v1024 = vmul.f32 %v982, 1.442695
        %v1025 = vpow.pop %v1024
        %v1026 = vmul.f32 %v983, 1.442695
        %v1027 = vpow.pop %v1026
        %v1028 = vmul.f32 %v984, 1.442695
        %v1029 = vpow.pop %v1028
        %v1030 = vmul.f32 %v985, 1.442695
        %v1031 = vpow.pop %v1030
        %v1032 = vmul.f32 %v986, 1.442695
        %v1033 = vpow.pop %v1032
        %v1034 = vmul.f32 %v987, 1.442695
        %v1035 = vpow.pop %v1034
        %v1036 = vmul.f32 %v988, 1.442695
        %v1037 = vpow.pop %v1036
        %v1038 = vmul.f32 %v989, 1.442695
        %v1039 = vpow.pop %v1038
        %v1040 = vmul.f32 %v990, 1.442695
        %v1041 = vpow.pop %v1040
        %v1042 = vmul.f32 %v991, 1.442695
        %v1043 = vpow.pop %v1042
        %v1044 = vmul.f32 %v992, 1.442695
        %v1045 = vpow.pop %v1044
        %v1046 = vmul.f32 %v993, 1.442695
        %v1047 = vpow.pop %v1046
        %v1048 = vmul.f32 %v994, 1.442695
        %v1049 = vpow.pop %v1048
        %v1050 = vmul.f32 %v995, 1.442695
        %v1051 = vpow.pop %v1050
        %v1052 = vmul.f32 %v996, 1.442695
        %v1053 = vpow.pop %v1052
        %v1054 = vmul.f32 %v997, 1.442695
        %v1055 = vpow.pop %v1054
        %v1056 = vmul.f32 %v998, 1.442695
        %v1057 = vpow.pop %v1056
        %v1058 = vmul.f32 %v999, 1.442695
        %v1059 = vpow.pop %v1058
        %v1060 = vmul.f32 %v1000, 1.442695
        %v1061 = vpow.pop %v1060
        %v1062 = vmul.f32 %v1001, 1.442695
        %v1063 = vpow.pop %v1062
        %v1064 = vmul.f32 %v1002, 1.442695
        %v1065 = vpow.pop %v1064
        %v1066 = vmul.f32 %v1003, 1.442695
        %v1067 = vpow.pop %v1066
        %vm1100 = vcmask 1041409
        %v1101 = vsel %vm1100, %v1007, %v1005
        %vm1102 = vcmask 1042434
        %v1103 = vsel %vm1102, %v1009, %v1101
        %vm1104 = vcmask 1043459
        %v1105 = vsel %vm1104, %v1011, %v1103
        %vm1106 = vcmask 1044484
        %v1107 = vsel %vm1106, %v1013, %v1105
        %vm1108 = vcmask 1045509
        %v1109 = vsel %vm1108, %v1015, %v1107
        %vm1110 = vcmask 1046534
        %v1111 = vsel %vm1110, %v1017, %v1109
        %vm1112 = vcmask 1047559
        %v1113 = vsel %vm1112, %v1019, %v1111
        %v1114 = vsel %vm1100, %v1023, %v1021
        %v1115 = vsel %vm1102, %v1025, %v1114
        %v1116 = vsel %vm1104, %v1027, %v1115
        %v1117 = vsel %vm1106, %v1029, %v1116
        %v1118 = vsel %vm1108, %v1031, %v1117
        %v1119 = vsel %vm1110, %v1033, %v1118
        %v1120 = vsel %vm1112, %v1035, %v1119
        %v1121 = vsel %vm1100, %v1039, %v1037
        %v1122 = vsel %vm1102, %v1041, %v1121
        %v1123 = vsel %vm1104, %v1043, %v1122
        %v1124 = vsel %vm1106, %v1045, %v1123
        %v1125 = vsel %vm1108, %v1047, %v1124
        %v1126 = vsel %vm1110, %v1049, %v1125
        %v1127 = vsel %vm1112, %v1051, %v1126
        %v1128 = vsel %vm1100, %v1055, %v1053
        %v1129 = vsel %vm1102, %v1057, %v1128
        %v1130 = vsel %vm1104, %v1059, %v1129
        %v1131 = vsel %vm1106, %v1061, %v1130
        %v1132 = vsel %vm1108, %v1063, %v1131
        %v1133 = vsel %vm1110, %v1065, %v1132
        %v1134 = vsel %vm1112, %v1067, %v1133
        %1135 = vrot.lane.b32.xlu0 %v1113, 124
        %v1136 = vpop.permute.xlu0 %1135
        %1137 = vrot.lane.b32.xlu0 %v1120, 124
        %v1138 = vpop.permute.xlu0 %1137
        %1139 = vrot.lane.b32.xlu0 %v1127, 124
        %v1140 = vpop.permute.xlu0 %1139
        %1141 = vrot.lane.b32.xlu0 %v1134, 124
        %v1142 = vpop.permute.xlu0 %1141
        %1147 = vxpose.xlu0.b32.start [1/16] %v1136, 128
        %1148 = vxpose.xlu0.b32.cont [2/16] %v1138, 128
        %1149 = vxpose.xlu0.b32.cont [3/16] %v1140, 128
        %1150 = vxpose.xlu0.b32.cont [4/16] %v1142, 128
        %1151 = vxpose.xlu0.b32.cont [5/16] 0.0, 128
        %1152 = vxpose.xlu0.b32.cont [6/16] 0.0, 128
        %1153 = vxpose.xlu0.b32.cont [7/16] 0.0, 128
        %1154 = vxpose.xlu0.b32.cont [8/16] 0.0, 128
        %1155 = vxpose.xlu0.b32.cont [9/16] 0.0, 128
        %1156 = vxpose.xlu0.b32.cont [10/16] 0.0, 128
        %1157 = vxpose.xlu0.b32.cont [11/16] 0.0, 128
        %1158 = vxpose.xlu0.b32.cont [12/16] 0.0, 128
        %1159 = vxpose.xlu0.b32.cont [13/16] 0.0, 128
        %1160 = vxpose.xlu0.b32.cont [14/16] 0.0, 128
        %1161 = vxpose.xlu0.b32.cont [15/16] 0.0, 128
        %1162 = vxpose.xlu0.b32.end [16/16] 0.0, 128
        %v1163 = vpop.trf.xlu0
        %v1164 = vpop.trf.xlu0
        %v1165 = vpop.trf.xlu0
        %v1166 = vpop.trf.xlu0
        %v1167 = vpop.trf.xlu0
        %v1168 = vpop.trf.xlu0
        %v1169 = vpop.trf.xlu0
        %v1170 = vpop.trf.xlu0
        %v1171 = vpop.trf.xlu0
        %v1172 = vpop.trf.xlu0
        %v1173 = vpop.trf.xlu0
        %v1174 = vpop.trf.xlu0
        %v1175 = vpop.trf.xlu0
        %v1176 = vpop.trf.xlu0
        %v1177 = vpop.trf.xlu0
        %v1178 = vpop.trf.xlu0
        %v1179 = vpack.c.bf16 %v1163, %v1163
        %v1180 = vld [vmem:[%s2] sm:$0xff]
        %v1181 = vld [vmem:[%s2 + $0x8] sm:$0xff]
        %v1182 = vld [vmem:[%s2 + $0x10] sm:$0xff]
        %v1183 = vld [vmem:[%s2 + $0x18] sm:$0xff]
        %v1184 = vld [vmem:[%s2 + $0x20] sm:$0xff]
        %v1185 = vld [vmem:[%s2 + $0x28] sm:$0xff]
        %v1186 = vld [vmem:[%s2 + $0x30] sm:$0xff]
        %v1187 = vld [vmem:[%s2 + $0x38] sm:$0xff]
        %v1188 = vld [vmem:[%s3] sm:$0xf]
        %v1190 = vperm.slane %v1188, 0
        %v1191 = vperm.slane %v1188, 1
        %v1192 = vperm.slane %v1188, 2
        %v1193 = vperm.slane %v1188, 3
        %v1206 = vunpack.c.l.b16 %v1180
        %v1207 = vunpack.c.h.b16 %v1180
        %v1208 = vunpack.c.l.b16 %v1181
        %v1209 = vunpack.c.h.b16 %v1181
        %v1210 = vunpack.c.l.b16 %v1182
        %v1211 = vunpack.c.h.b16 %v1182
        %v1212 = vunpack.c.l.b16 %v1183
        %v1213 = vunpack.c.h.b16 %v1183
        %v1214 = vunpack.c.l.b16 %v1184
        %v1215 = vunpack.c.h.b16 %v1184
        %v1216 = vunpack.c.l.b16 %v1185
        %v1217 = vunpack.c.h.b16 %v1185
        %v1218 = vunpack.c.l.b16 %v1186
        %v1219 = vunpack.c.h.b16 %v1186
        %v1220 = vunpack.c.l.b16 %v1187
        %v1221 = vunpack.c.h.b16 %v1187
        %v1222 = vpack.c.b16 %v1210, %v1206
        %v1223 = vpack.c.b16 %v1211, %v1207
        %v1224 = vpack.c.b16 %v1212, %v1208
        %v1225 = vpack.c.b16 %v1213, %v1209
        %v1226 = vpack.c.b16 %v1218, %v1214
        %v1227 = vpack.c.b16 %v1219, %v1215
        %v1228 = vpack.c.b16 %v1220, %v1216
        %v1229 = vpack.c.b16 %v1221, %v1217
        %vm1238 = vcmask 261120
        %v1240 = vsel %vm1238, %v1179, 0
        %1242 = vmatpush.bf16.msra.mxu0 0
        %1243 = vmatpush.bf16.msra.mxu0 0
        %1244 = vmatpush.bf16.msra.mxu0 0
        %1245 = vmatpush.bf16.msra.mxu0 0
        %1246 = vmatpush.bf16.msra.mxu0 0
        %1247 = vmatpush.bf16.msra.mxu0 0
        %1248 = vmatpush.bf16.msra.mxu0 %v1226
        %1249 = vmatpush.bf16.msra.mxu0 %v1222
        %1250 = vmatmul.bf16.gmra.mxu0 %v1240
        %v1251 = vpop.f32.mrf.mxu0
        %v1252 = vadd.f32 %v1190, %v1251
        %v1253 = vpop.f32.mrf.mxu0
        %1254 = vdwg.mxu0
        %1255 = vmatpush.bf16.msra.mxu0 0
        %1256 = vmatpush.bf16.msra.mxu0 0
        %1257 = vmatpush.bf16.msra.mxu0 0
        %1258 = vmatpush.bf16.msra.mxu0 0
        %1259 = vmatpush.bf16.msra.mxu0 0
        %1260 = vmatpush.bf16.msra.mxu0 0
        %1261 = vmatpush.bf16.msra.mxu0 %v1227
        %1262 = vmatpush.bf16.msra.mxu0 %v1223
        %1263 = vmatmul.bf16.gmra.mxu0 %v1240
        %v1264 = vpop.f32.mrf.mxu0
        %v1265 = vadd.f32 %v1191, %v1264
        %v1266 = vpop.f32.mrf.mxu0
        %1267 = vdwg.mxu0
        %1268 = vmatpush.bf16.msra.mxu0 0
        %1269 = vmatpush.bf16.msra.mxu0 0
        %1270 = vmatpush.bf16.msra.mxu0 0
        %1271 = vmatpush.bf16.msra.mxu0 0
        %1272 = vmatpush.bf16.msra.mxu0 0
        %1273 = vmatpush.bf16.msra.mxu0 0
        %1274 = vmatpush.bf16.msra.mxu0 %v1228
        %1275 = vmatpush.bf16.msra.mxu0 %v1224
        %1276 = vmatmul.bf16.gmra.mxu0 %v1240
        %v1277 = vpop.f32.mrf.mxu0
        %v1278 = vadd.f32 %v1192, %v1277
        %v1279 = vpop.f32.mrf.mxu0
        %1280 = vdwg.mxu0
        %1281 = vmatpush.bf16.msra.mxu0 0
        %1282 = vmatpush.bf16.msra.mxu0 0
        %1283 = vmatpush.bf16.msra.mxu0 0
        %1284 = vmatpush.bf16.msra.mxu0 0
        %1285 = vmatpush.bf16.msra.mxu0 0
        %1286 = vmatpush.bf16.msra.mxu0 0
        %1287 = vmatpush.bf16.msra.mxu0 %v1229
        %1288 = vmatpush.bf16.msra.mxu0 %v1225
        %1289 = vmatmul.bf16.gmra.mxu0 %v1240
        %v1290 = vpop.f32.mrf.mxu0
        %v1291 = vadd.f32 %v1193, %v1290
        %v1292 = vpop.f32.mrf.mxu0
        %1293 = vdwg.mxu0
        %v1294 = vmax.f32 %v1252, 0.0
        %v1295 = vmax.f32 %v1265, 0.0
        %v1296 = vmax.f32 %v1278, 0.0
        %v1297 = vmax.f32 %v1291, 0.0
        %v1298 = vpack.c.bf16 %v1294, %v1294
        %v1299 = vpack.c.bf16 %v1295, %v1295
        %v1300 = vpack.c.bf16 %v1296, %v1296
        %v1301 = vpack.c.bf16 %v1297, %v1297
        %v1302 = vld [vmem:[%s4] sm:$0xff]
        %v1303 = vld [vmem:[%s4 + $0x8] sm:$0xff]
        %v1304 = vld [vmem:[%s4 + $0x10] sm:$0xff]
        %v1305 = vld [vmem:[%s4 + $0x18] sm:$0xff]
        %v1306 = vld [vmem:[%s4 + $0x20] sm:$0xff]
        %v1307 = vld [vmem:[%s4 + $0x28] sm:$0xff]
        %v1308 = vld [vmem:[%s4 + $0x30] sm:$0xff]
        %v1309 = vld [vmem:[%s4 + $0x38] sm:$0xff]
        %v1310 = vld [vmem:[%s4 + $0x40] sm:$0xff]
        %v1311 = vld [vmem:[%s4 + $0x48] sm:$0xff]
        %v1312 = vld [vmem:[%s4 + $0x50] sm:$0xff]
        %v1313 = vld [vmem:[%s4 + $0x58] sm:$0xff]
        %v1314 = vld [vmem:[%s4 + $0x60] sm:$0xff]
        %v1315 = vld [vmem:[%s4 + $0x68] sm:$0xff]
        %v1316 = vld [vmem:[%s4 + $0x70] sm:$0xff]
        %v1317 = vld [vmem:[%s4 + $0x78] sm:$0xff]
        %v1318 = vld [vmem:[%s4 + $0x80] sm:$0xff]
        %v1319 = vld [vmem:[%s4 + $0x88] sm:$0xff]
        %v1320 = vld [vmem:[%s4 + $0x90] sm:$0xff]
        %v1321 = vld [vmem:[%s4 + $0x98] sm:$0xff]
        %v1322 = vld [vmem:[%s4 + $0xa0] sm:$0xff]
        %v1323 = vld [vmem:[%s4 + $0xa8] sm:$0xff]
        %v1324 = vld [vmem:[%s4 + $0xb0] sm:$0xff]
        %v1325 = vld [vmem:[%s4 + $0xb8] sm:$0xff]
        %v1326 = vld [vmem:[%s4 + $0xc0] sm:$0xff]
        %v1327 = vld [vmem:[%s4 + $0xc8] sm:$0xff]
        %v1328 = vld [vmem:[%s4 + $0xd0] sm:$0xff]
        %v1329 = vld [vmem:[%s4 + $0xd8] sm:$0xff]
        %v1330 = vld [vmem:[%s4 + $0xe0] sm:$0xff]
        %v1331 = vld [vmem:[%s4 + $0xe8] sm:$0xff]
        %v1332 = vld [vmem:[%s4 + $0xf0] sm:$0xff]
        %v1333 = vld [vmem:[%s4 + $0xf8] sm:$0xff]
        %v1334 = vld [vmem:[%s4 + $0x100] sm:$0xff]
        %v1335 = vld [vmem:[%s4 + $0x108] sm:$0xff]
        %v1336 = vld [vmem:[%s4 + $0x110] sm:$0xff]
        %v1337 = vld [vmem:[%s4 + $0x118] sm:$0xff]
        %v1338 = vld [vmem:[%s4 + $0x120] sm:$0xff]
        %v1339 = vld [vmem:[%s4 + $0x128] sm:$0xff]
        %v1340 = vld [vmem:[%s4 + $0x130] sm:$0xff]
        %v1341 = vld [vmem:[%s4 + $0x138] sm:$0xff]
        %v1342 = vld [vmem:[%s4 + $0x140] sm:$0xff]
        %v1343 = vld [vmem:[%s4 + $0x148] sm:$0xff]
        %v1344 = vld [vmem:[%s4 + $0x150] sm:$0xff]
        %v1345 = vld [vmem:[%s4 + $0x158] sm:$0xff]
        %v1346 = vld [vmem:[%s4 + $0x160] sm:$0xff]
        %v1347 = vld [vmem:[%s4 + $0x168] sm:$0xff]
        %v1348 = vld [vmem:[%s4 + $0x170] sm:$0xff]
        %v1349 = vld [vmem:[%s4 + $0x178] sm:$0xff]
        %v1350 = vld [vmem:[%s4 + $0x180] sm:$0xff]
        %v1351 = vld [vmem:[%s4 + $0x188] sm:$0xff]
        %v1352 = vld [vmem:[%s4 + $0x190] sm:$0xff]
        %v1353 = vld [vmem:[%s4 + $0x198] sm:$0xff]
        %v1354 = vld [vmem:[%s4 + $0x1a0] sm:$0xff]
        %v1355 = vld [vmem:[%s4 + $0x1a8] sm:$0xff]
        %v1356 = vld [vmem:[%s4 + $0x1b0] sm:$0xff]
        %v1357 = vld [vmem:[%s4 + $0x1b8] sm:$0xff]
        %v1358 = vld [vmem:[%s4 + $0x1c0] sm:$0xff]
        %v1359 = vld [vmem:[%s4 + $0x1c8] sm:$0xff]
        %v1360 = vld [vmem:[%s4 + $0x1d0] sm:$0xff]
        %v1361 = vld [vmem:[%s4 + $0x1d8] sm:$0xff]
        %v1362 = vld [vmem:[%s4 + $0x1e0] sm:$0xff]
        %v1363 = vld [vmem:[%s4 + $0x1e8] sm:$0xff]
        %v1364 = vld [vmem:[%s4 + $0x1f0] sm:$0xff]
        %v1365 = vld [vmem:[%s4 + $0x1f8] sm:$0xff]
        %v1366 = vld [vmem:[%s5] sm:$0x3]
        %v1368 = vperm.slane %v1366, 0
        %v1369 = vperm.slane %v1366, 1
        %v1436 = vunpack.c.l.b16 %v1302
        %v1437 = vunpack.c.h.b16 %v1302
        %v1438 = vunpack.c.l.b16 %v1303
        %v1439 = vunpack.c.h.b16 %v1303
        %v1440 = vunpack.c.l.b16 %v1304
        %v1441 = vunpack.c.h.b16 %v1304
        %v1442 = vunpack.c.l.b16 %v1305
        %v1443 = vunpack.c.h.b16 %v1305
        %v1444 = vunpack.c.l.b16 %v1306
        %v1445 = vunpack.c.h.b16 %v1306
        %v1446 = vunpack.c.l.b16 %v1307
        %v1447 = vunpack.c.h.b16 %v1307
        %v1448 = vunpack.c.l.b16 %v1308
        %v1449 = vunpack.c.h.b16 %v1308
        %v1450 = vunpack.c.l.b16 %v1309
        %v1451 = vunpack.c.h.b16 %v1309
        %v1452 = vunpack.c.l.b16 %v1310
        %v1453 = vunpack.c.h.b16 %v1310
        %v1454 = vunpack.c.l.b16 %v1311
        %v1455 = vunpack.c.h.b16 %v1311
        %v1456 = vunpack.c.l.b16 %v1312
        %v1457 = vunpack.c.h.b16 %v1312
        %v1458 = vunpack.c.l.b16 %v1313
        %v1459 = vunpack.c.h.b16 %v1313
        %v1460 = vunpack.c.l.b16 %v1314
        %v1461 = vunpack.c.h.b16 %v1314
        %v1462 = vunpack.c.l.b16 %v1315
        %v1463 = vunpack.c.h.b16 %v1315
        %v1464 = vunpack.c.l.b16 %v1316
        %v1465 = vunpack.c.h.b16 %v1316
        %v1466 = vunpack.c.l.b16 %v1317
        %v1467 = vunpack.c.h.b16 %v1317
        %v1468 = vunpack.c.l.b16 %v1318
        %v1469 = vunpack.c.h.b16 %v1318
        %v1470 = vunpack.c.l.b16 %v1319
        %v1471 = vunpack.c.h.b16 %v1319
        %v1472 = vunpack.c.l.b16 %v1320
        %v1473 = vunpack.c.h.b16 %v1320
        %v1474 = vunpack.c.l.b16 %v1321
        %v1475 = vunpack.c.h.b16 %v1321
        %v1476 = vunpack.c.l.b16 %v1322
        %v1477 = vunpack.c.h.b16 %v1322
        %v1478 = vunpack.c.l.b16 %v1323
        %v1479 = vunpack.c.h.b16 %v1323
        %v1480 = vunpack.c.l.b16 %v1324
        %v1481 = vunpack.c.h.b16 %v1324
        %v1482 = vunpack.c.l.b16 %v1325
        %v1483 = vunpack.c.h.b16 %v1325
        %v1484 = vunpack.c.l.b16 %v1326
        %v1485 = vunpack.c.h.b16 %v1326
        %v1486 = vunpack.c.l.b16 %v1327
        %v1487 = vunpack.c.h.b16 %v1327
        %v1488 = vunpack.c.l.b16 %v1328
        %v1489 = vunpack.c.h.b16 %v1328
        %v1490 = vunpack.c.l.b16 %v1329
        %v1491 = vunpack.c.h.b16 %v1329
        %v1492 = vunpack.c.l.b16 %v1330
        %v1493 = vunpack.c.h.b16 %v1330
        %v1494 = vunpack.c.l.b16 %v1331
        %v1495 = vunpack.c.h.b16 %v1331
        %v1496 = vunpack.c.l.b16 %v1332
        %v1497 = vunpack.c.h.b16 %v1332
        %v1498 = vunpack.c.l.b16 %v1333
        %v1499 = vunpack.c.h.b16 %v1333
        %v1500 = vunpack.c.l.b16 %v1334
        %v1501 = vunpack.c.h.b16 %v1334
        %v1502 = vunpack.c.l.b16 %v1335
        %v1503 = vunpack.c.h.b16 %v1335
        %v1504 = vunpack.c.l.b16 %v1336
        %v1505 = vunpack.c.h.b16 %v1336
        %v1506 = vunpack.c.l.b16 %v1337
        %v1507 = vunpack.c.h.b16 %v1337
        %v1508 = vunpack.c.l.b16 %v1338
        %v1509 = vunpack.c.h.b16 %v1338
        %v1510 = vunpack.c.l.b16 %v1339
        %v1511 = vunpack.c.h.b16 %v1339
        %v1512 = vunpack.c.l.b16 %v1340
        %v1513 = vunpack.c.h.b16 %v1340
        %v1514 = vunpack.c.l.b16 %v1341
        %v1515 = vunpack.c.h.b16 %v1341
        %v1516 = vunpack.c.l.b16 %v1342
        %v1517 = vunpack.c.h.b16 %v1342
        %v1518 = vunpack.c.l.b16 %v1343
        %v1519 = vunpack.c.h.b16 %v1343
        %v1520 = vunpack.c.l.b16 %v1344
        %v1521 = vunpack.c.h.b16 %v1344
        %v1522 = vunpack.c.l.b16 %v1345
        %v1523 = vunpack.c.h.b16 %v1345
        %v1524 = vunpack.c.l.b16 %v1346
        %v1525 = vunpack.c.h.b16 %v1346
        %v1526 = vunpack.c.l.b16 %v1347
        %v1527 = vunpack.c.h.b16 %v1347
        %v1528 = vunpack.c.l.b16 %v1348
        %v1529 = vunpack.c.h.b16 %v1348
        %v1530 = vunpack.c.l.b16 %v1349
        %v1531 = vunpack.c.h.b16 %v1349
        %v1532 = vunpack.c.l.b16 %v1350
        %v1533 = vunpack.c.h.b16 %v1350
        %v1534 = vunpack.c.l.b16 %v1351
        %v1535 = vunpack.c.h.b16 %v1351
        %v1536 = vunpack.c.l.b16 %v1352
        %v1537 = vunpack.c.h.b16 %v1352
        %v1538 = vunpack.c.l.b16 %v1353
        %v1539 = vunpack.c.h.b16 %v1353
        %v1540 = vunpack.c.l.b16 %v1354
        %v1541 = vunpack.c.h.b16 %v1354
        %v1542 = vunpack.c.l.b16 %v1355
        %v1543 = vunpack.c.h.b16 %v1355
        %v1544 = vunpack.c.l.b16 %v1356
        %v1545 = vunpack.c.h.b16 %v1356
        %v1546 = vunpack.c.l.b16 %v1357
        %v1547 = vunpack.c.h.b16 %v1357
        %v1548 = vunpack.c.l.b16 %v1358
        %v1549 = vunpack.c.h.b16 %v1358
        %v1550 = vunpack.c.l.b16 %v1359
        %v1551 = vunpack.c.h.b16 %v1359
        %v1552 = vunpack.c.l.b16 %v1360
        %v1553 = vunpack.c.h.b16 %v1360
        %v1554 = vunpack.c.l.b16 %v1361
        %v1555 = vunpack.c.h.b16 %v1361
        %v1556 = vunpack.c.l.b16 %v1362
        %v1557 = vunpack.c.h.b16 %v1362
        %v1558 = vunpack.c.l.b16 %v1363
        %v1559 = vunpack.c.h.b16 %v1363
        %v1560 = vunpack.c.l.b16 %v1364
        %v1561 = vunpack.c.h.b16 %v1364
        %v1562 = vunpack.c.l.b16 %v1365
        %v1563 = vunpack.c.h.b16 %v1365
        %v1564 = vpack.c.b16 %v1438, %v1436
        %v1565 = vpack.c.b16 %v1439, %v1437
        %v1566 = vpack.c.b16 %v1442, %v1440
        %v1567 = vpack.c.b16 %v1443, %v1441
        %v1568 = vpack.c.b16 %v1446, %v1444
        %v1569 = vpack.c.b16 %v1447, %v1445
        %v1570 = vpack.c.b16 %v1450, %v1448
        %v1571 = vpack.c.b16 %v1451, %v1449
        %v1572 = vpack.c.b16 %v1454, %v1452
        %v1573 = vpack.c.b16 %v1455, %v1453
        %v1574 = vpack.c.b16 %v1458, %v1456
        %v1575 = vpack.c.b16 %v1459, %v1457
        %v1576 = vpack.c.b16 %v1462, %v1460
        %v1577 = vpack.c.b16 %v1463, %v1461
        %v1578 = vpack.c.b16 %v1466, %v1464
        %v1579 = vpack.c.b16 %v1467, %v1465
        %v1580 = vpack.c.b16 %v1470, %v1468
        %v1581 = vpack.c.b16 %v1471, %v1469
        %v1582 = vpack.c.b16 %v1474, %v1472
        %v1583 = vpack.c.b16 %v1475, %v1473
        %v1584 = vpack.c.b16 %v1478, %v1476
        %v1585 = vpack.c.b16 %v1479, %v1477
        %v1586 = vpack.c.b16 %v1482, %v1480
        %v1587 = vpack.c.b16 %v1483, %v1481
        %v1588 = vpack.c.b16 %v1486, %v1484
        %v1589 = vpack.c.b16 %v1487, %v1485
        %v1590 = vpack.c.b16 %v1490, %v1488
        %v1591 = vpack.c.b16 %v1491, %v1489
        %v1592 = vpack.c.b16 %v1494, %v1492
        %v1593 = vpack.c.b16 %v1495, %v1493
        %v1594 = vpack.c.b16 %v1498, %v1496
        %v1595 = vpack.c.b16 %v1499, %v1497
        %v1596 = vpack.c.b16 %v1502, %v1500
        %v1597 = vpack.c.b16 %v1503, %v1501
        %v1598 = vpack.c.b16 %v1506, %v1504
        %v1599 = vpack.c.b16 %v1507, %v1505
        %v1600 = vpack.c.b16 %v1510, %v1508
        %v1601 = vpack.c.b16 %v1511, %v1509
        %v1602 = vpack.c.b16 %v1514, %v1512
        %v1603 = vpack.c.b16 %v1515, %v1513
        %v1604 = vpack.c.b16 %v1518, %v1516
        %v1605 = vpack.c.b16 %v1519, %v1517
        %v1606 = vpack.c.b16 %v1522, %v1520
        %v1607 = vpack.c.b16 %v1523, %v1521
        %v1608 = vpack.c.b16 %v1526, %v1524
        %v1609 = vpack.c.b16 %v1527, %v1525
        %v1610 = vpack.c.b16 %v1530, %v1528
        %v1611 = vpack.c.b16 %v1531, %v1529
        %v1612 = vpack.c.b16 %v1534, %v1532
        %v1613 = vpack.c.b16 %v1535, %v1533
        %v1614 = vpack.c.b16 %v1538, %v1536
        %v1615 = vpack.c.b16 %v1539, %v1537
        %v1616 = vpack.c.b16 %v1542, %v1540
        %v1617 = vpack.c.b16 %v1543, %v1541
        %v1618 = vpack.c.b16 %v1546, %v1544
        %v1619 = vpack.c.b16 %v1547, %v1545
        %v1620 = vpack.c.b16 %v1550, %v1548
        %v1621 = vpack.c.b16 %v1551, %v1549
        %v1622 = vpack.c.b16 %v1554, %v1552
        %v1623 = vpack.c.b16 %v1555, %v1553
        %v1624 = vpack.c.b16 %v1558, %v1556
        %v1625 = vpack.c.b16 %v1559, %v1557
        %v1626 = vpack.c.b16 %v1562, %v1560
        %v1627 = vpack.c.b16 %v1563, %v1561
        %1692 = vmatpush.bf16.msra.mxu0 %v1578
        %1693 = vmatpush.bf16.msra.mxu0 %v1576
        %1694 = vmatpush.bf16.msra.mxu0 %v1574
        %1695 = vmatpush.bf16.msra.mxu0 %v1572
        %1696 = vmatpush.bf16.msra.mxu0 %v1570
        %1697 = vmatpush.bf16.msra.mxu0 %v1568
        %1698 = vmatpush.bf16.msra.mxu0 %v1566
        %1699 = vmatpush.bf16.msra.mxu0 %v1564
        %1700 = vmatmul.bf16.gmra.mxu0 %v1298
        %v1701 = vpop.f32.mrf.mxu0
        %v1702 = vadd.f32 %v1368, %v1701
        %v1703 = vpop.f32.mrf.mxu0
        %1704 = vdwg.mxu0
        %1705 = vmatpush.bf16.msra.mxu0 %v1594
        %1706 = vmatpush.bf16.msra.mxu0 %v1592
        %1707 = vmatpush.bf16.msra.mxu0 %v1590
        %1708 = vmatpush.bf16.msra.mxu0 %v1588
        %1709 = vmatpush.bf16.msra.mxu0 %v1586
        %1710 = vmatpush.bf16.msra.mxu0 %v1584
        %1711 = vmatpush.bf16.msra.mxu0 %v1582
        %1712 = vmatpush.bf16.msra.mxu0 %v1580
        %1713 = vmatmul.bf16.gmra.mxu0 %v1299
        %v1714 = vpop.f32.mrf.mxu0
        %v1715 = vadd.f32 %v1702, %v1714
        %v1716 = vpop.f32.mrf.mxu0
        %1717 = vdwg.mxu0
        %1718 = vmatpush.bf16.msra.mxu0 %v1610
        %1719 = vmatpush.bf16.msra.mxu0 %v1608
        %1720 = vmatpush.bf16.msra.mxu0 %v1606
        %1721 = vmatpush.bf16.msra.mxu0 %v1604
        %1722 = vmatpush.bf16.msra.mxu0 %v1602
        %1723 = vmatpush.bf16.msra.mxu0 %v1600
        %1724 = vmatpush.bf16.msra.mxu0 %v1598
        %1725 = vmatpush.bf16.msra.mxu0 %v1596
        %1726 = vmatmul.bf16.gmra.mxu0 %v1300
        %v1727 = vpop.f32.mrf.mxu0
        %v1728 = vadd.f32 %v1715, %v1727
        %v1729 = vpop.f32.mrf.mxu0
        %1730 = vdwg.mxu0
        %1731 = vmatpush.bf16.msra.mxu0 %v1626
        %1732 = vmatpush.bf16.msra.mxu0 %v1624
        %1733 = vmatpush.bf16.msra.mxu0 %v1622
        %1734 = vmatpush.bf16.msra.mxu0 %v1620
        %1735 = vmatpush.bf16.msra.mxu0 %v1618
        %1736 = vmatpush.bf16.msra.mxu0 %v1616
        %1737 = vmatpush.bf16.msra.mxu0 %v1614
        %1738 = vmatpush.bf16.msra.mxu0 %v1612
        %1739 = vmatmul.bf16.gmra.mxu0 %v1301
        %v1740 = vpop.f32.mrf.mxu0
        %v1741 = vadd.f32 %v1728, %v1740
        %v1742 = vpop.f32.mrf.mxu0
        %1743 = vdwg.mxu0
        %1744 = vmatpush.bf16.msra.mxu0 %v1579
        %1745 = vmatpush.bf16.msra.mxu0 %v1577
        %1746 = vmatpush.bf16.msra.mxu0 %v1575
        %1747 = vmatpush.bf16.msra.mxu0 %v1573
        %1748 = vmatpush.bf16.msra.mxu0 %v1571
        %1749 = vmatpush.bf16.msra.mxu0 %v1569
        %1750 = vmatpush.bf16.msra.mxu0 %v1567
        %1751 = vmatpush.bf16.msra.mxu0 %v1565
        %1752 = vmatmul.bf16.gmra.mxu0 %v1298
        %v1753 = vpop.f32.mrf.mxu0
        %v1754 = vadd.f32 %v1369, %v1753
        %v1755 = vpop.f32.mrf.mxu0
        %1756 = vdwg.mxu0
        %1757 = vmatpush.bf16.msra.mxu0 %v1595
        %1758 = vmatpush.bf16.msra.mxu0 %v1593
        %1759 = vmatpush.bf16.msra.mxu0 %v1591
        %1760 = vmatpush.bf16.msra.mxu0 %v1589
        %1761 = vmatpush.bf16.msra.mxu0 %v1587
        %1762 = vmatpush.bf16.msra.mxu0 %v1585
        %1763 = vmatpush.bf16.msra.mxu0 %v1583
        %1764 = vmatpush.bf16.msra.mxu0 %v1581
        %1765 = vmatmul.bf16.gmra.mxu0 %v1299
        %v1766 = vpop.f32.mrf.mxu0
        %v1767 = vadd.f32 %v1754, %v1766
        %v1768 = vpop.f32.mrf.mxu0
        %1769 = vdwg.mxu0
        %1770 = vmatpush.bf16.msra.mxu0 %v1611
        %1771 = vmatpush.bf16.msra.mxu0 %v1609
        %1772 = vmatpush.bf16.msra.mxu0 %v1607
        %1773 = vmatpush.bf16.msra.mxu0 %v1605
        %1774 = vmatpush.bf16.msra.mxu0 %v1603
        %1775 = vmatpush.bf16.msra.mxu0 %v1601
        %1776 = vmatpush.bf16.msra.mxu0 %v1599
        %1777 = vmatpush.bf16.msra.mxu0 %v1597
        %1778 = vmatmul.bf16.gmra.mxu0 %v1300
        %v1779 = vpop.f32.mrf.mxu0
        %v1780 = vadd.f32 %v1767, %v1779
        %v1781 = vpop.f32.mrf.mxu0
        %1782 = vdwg.mxu0
        %1783 = vmatpush.bf16.msra.mxu0 %v1627
        %1784 = vmatpush.bf16.msra.mxu0 %v1625
        %1785 = vmatpush.bf16.msra.mxu0 %v1623
        %1786 = vmatpush.bf16.msra.mxu0 %v1621
        %1787 = vmatpush.bf16.msra.mxu0 %v1619
        %1788 = vmatpush.bf16.msra.mxu0 %v1617
        %1789 = vmatpush.bf16.msra.mxu0 %v1615
        %1790 = vmatpush.bf16.msra.mxu0 %v1613
        %1791 = vmatmul.bf16.gmra.mxu0 %v1301
        %v1792 = vpop.f32.mrf.mxu0
        %v1793 = vadd.f32 %v1780, %v1792
        %v1794 = vpop.f32.mrf.mxu0
        %1795 = vdwg.mxu0
        %v1796 = vtanh.pop %v1741
        %vm1797 = vcmask 1043456
        %v1798 = vsel %vm1797, %v1796, -inf
        %v1799 = vrot.slane %v1798, 4
        %v1800 = vmax.f32 %v1798, %v1799
        %v1801 = vrot.slane %v1800, 2
        %v1802 = vmax.f32 %v1800, %v1801
        %v1803 = vrot.slane %v1802, 1
        %v1804 = vmax.f32 %v1802, %v1803
        %v1805 = vsub.f32 %v1796, %v1804
        %v1806 = vmul.f32 %v1805, 1.442695
        %v1807 = vpow.pop %v1806
        %v1808 = vsel %vm1797, %v1807, 0.0
        %v1809 = vrot.slane %v1808, 4
        %v1810 = vadd.f32 %v1808, %v1809
        %v1811 = vrot.slane %v1810, 2
        %v1812 = vadd.f32 %v1810, %v1811
        %v1813 = vrot.slane %v1812, 1
        %v1814 = vadd.f32 %v1812, %v1813
        %v1815 = vrcp.pop %v1814
        %v1816 = vmul.f32 %v1814, %v1815
        %v1817 = vsub.f32 1.0, %v1816
        %v1818 = vmul.f32 %v1815, %v1817
        %v1819 = vadd.f32 %v1815, %v1818
        %vm1820 = vweird.f32 %v1814
        %vm1821 = vweird.f32 %v1815
        %vm1822 = vmor %vm1820, %vm1821
        %v1823 = vsel %vm1822, %v1815, %v1819
        %v1824 = vand.u32 2147483647, %v1814
        %vm1825 = vcmp.eq.f32.partialorder %v1824, 8.507059e+37
        %v1826 = vand.u32 %v1814, 2147483648
        %v1827 = vor.u32 1.1754944e-38, %v1826
        %v1828 = vsel %vm1825, %v1827, %v1823
        %v1829 = vmul.f32 %v1807, %v1828
        %v1830 = vmul.f32 %v1793, %v1829
        %v1831 = vsel %vm1797, %v1830, 0.0
        %v1832 = vrot.slane %v1831, 4
        %v1833 = vadd.f32 %v1831, %v1832
        %v1834 = vrot.slane %v1833, 2
        %v1835 = vadd.f32 %v1833, %v1834
        %v1836 = vrot.slane %v1835, 1
        %v1837 = vadd.f32 %v1835, %v1836
        %v1838 = vxor.u32 %v1793, 2147483648
        %v1839 = vmul.f32 %v1838, 1.442695
        %v1840 = vpow.pop %v1839
        %v1841 = vadd.f32 %v1840, 1.0
        %v1842 = vrcp.pop %v1841
        %v1843 = vmul.f32 %v1841, %v1842
        %v1844 = vsub.f32 1.0, %v1843
        %v1845 = vmul.f32 %v1842, %v1844
        %v1846 = vadd.f32 %v1842, %v1845
        %vm1847 = vweird.f32 %v1841
        %vm1848 = vweird.f32 %v1842
        %vm1849 = vmor %vm1847, %vm1848
        %v1850 = vsel %vm1849, %v1842, %v1846
        %v1851 = vand.u32 2147483647, %v1841
        %vm1852 = vcmp.eq.f32.partialorder %v1851, 8.507059e+37
        %v1853 = vand.u32 %v1841, 2147483648
        %v1854 = vor.u32 1.1754944e-38, %v1853
        %v1855 = vsel %vm1852, %v1854, %v1850
        %v1856 = vmul.f32 1.0, %v1855
        %v1857 = vmul.f32 %v1856, %v1829
        %v1858 = vsel %vm1797, %v1857, 0.0
        %v1859 = vrot.slane %v1858, 4
        %v1860 = vadd.f32 %v1858, %v1859
        %v1861 = vrot.slane %v1860, 2
        %v1862 = vadd.f32 %v1860, %v1861
        %v1863 = vrot.slane %v1862, 1
        %v1864 = vadd.f32 %v1862, %v1863
        %1865 = vst [vmem:[%s303] sm:$0x1] %v1837
        %1866 = vst [vmem:[%s303 + $0x1] sm:$0x1] %v1864
        %1867 = vst [vmem:[%s310] sm:$0xf] %v1793
        %1868 = vst [vmem:[%s317] sm:$0xf] %v1796
        %s1869 = sand.u32 %s166, 1
        %s1870 = scalar_lea.sflag [#allocation4], %s1869
        %s1871 = sand.u32 %s166, 1
        %s1872 = smul.addr %s1871, 2
        %s1873 = scalar_lea.vmem [#allocation3], %s1872
        %s1874 = sand.u32 %s27, 1
        %s1875 = scalar_lea.sflag [#allocation6], %s1874
        %s1876 = sand.u32 %s192, 1
        %s1877 = smul.addr %s1876, 4
        %s1878 = scalar_lea.vmem [#allocation5], %s1877
        %s1879 = sand.u32 %s27, 1
        %s1880 = scalar_lea.sflag [#allocation6], %s1879
        %s1881 = sand.u32 %s218, 1
        %s1882 = smul.addr %s1881, 4
        %s1883 = scalar_lea.vmem [#allocation7], %s1882
        // Predicated region
        $region45: #{tpu_custom_call.1} parent=43 // pred_check
          %p1884 = pneg %p176
        $region46: #{tpu_custom_call.1} parent=43 // pred_check_branch
          %1886 = sbr.rel (%p1884) target = $region48
        $region47: #{tpu_custom_call.1} parent=43 // pred_region
          %1888 = vsyncadd %s1870, 0
          %s1889 = smul.addr %s27, 2
          %s1890 = scalar_lea.hbm %s6, %s1889
          %s1892 = sshll.u32 %s1873, 4
          %s1893 = int_to_ptr.vmem [resolvable:$true] %s1892
          %s1894 = sshll.u32 %s1890, 4
          %s1895 = int_to_ptr.hbm [resolvable:$true] %s1894
          %1897 = dma.vmem_to_hbm [thread:$0]  %s1893, 32, %s1895, %s1870
        $region48: #{tpu_custom_call.1} parent=43 // pred_fallthru
          _
        // Predicated region
        $region49: #{tpu_custom_call.1} parent=43 // pred_check
          %p1898 = pneg %p202
        $region50: #{tpu_custom_call.1} parent=43 // pred_check_branch
          %1900 = sbr.rel (%p1898) target = $region52
        $region51: #{tpu_custom_call.1} parent=43 // pred_region
          %1902 = vsyncadd %s1875, 0
          %s1903 = smul.addr %s27, 4
          %s1904 = scalar_lea.hbm %s7, %s1903
          %s1906 = sshll.u32 %s1878, 4
          %s1907 = int_to_ptr.vmem [resolvable:$true] %s1906
          %s1908 = sshll.u32 %s1904, 4
          %s1909 = int_to_ptr.hbm [resolvable:$true] %s1908
          %1911 = dma.vmem_to_hbm [thread:$0]  %s1907, 64, %s1909, %s1875
        $region52: #{tpu_custom_call.1} parent=43 // pred_fallthru
          _
        // Predicated region
        $region53: #{tpu_custom_call.1} parent=43 // pred_check
          %p1912 = pneg %p228
        $region54: #{tpu_custom_call.1} parent=43 // pred_check_branch
          %1914 = sbr.rel (%p1912) target = $region56
        $region55: #{tpu_custom_call.1} parent=43 // pred_region
          %1916 = vsyncadd %s1880, 0
          %s1917 = smul.addr %s27, 4
          %s1918 = scalar_lea.hbm %s8, %s1917
          %s1920 = sshll.u32 %s1883, 4
          %s1921 = int_to_ptr.vmem [resolvable:$true] %s1920
          %s1922 = sshll.u32 %s1918, 4
          %s1923 = int_to_ptr.hbm [resolvable:$true] %s1922
          %1925 = dma.vmem_to_hbm [thread:$0]  %s1921, 64, %s1923, %s1880
        $region56: #{tpu_custom_call.1} parent=43 // pred_fallthru
          _
      $region44: #{tpu_custom_call.1} parent=5 // pred_fallthru
        _
      %p1926 = scmp.le.s32.totalorder 2, %s22
      // Predicated region
      $region57: #{tpu_custom_call.1} parent=5 // pred_check
        %p1927 = pneg %p1926
      $region58: #{tpu_custom_call.1} parent=5 // pred_check_branch
        %1929 = sbr.rel (%p1927) target = $region60
      $region59: #{tpu_custom_call.1} parent=5 // pred_region
        %s1930 = ssub.s32 %s22, 2
        // Predicated region
        $region61: #{tpu_custom_call.1} parent=59 // pred_check
          %p1931 = pneg %p182
        $region62: #{tpu_custom_call.1} parent=59 // pred_check_branch
          %1933 = sbr.rel (%p1931) target = $region64
        $region63: #{tpu_custom_call.1} parent=59 // pred_region
          %s1934 = sand.u32 %s167, 1
          %s1935 = scalar_lea.sflag [#allocation4], %s1934
          %s1936 = sand.u32 %s167, 1
          %s1937 = smul.addr %s1936, 2
          %s1938 = scalar_lea.vmem [#allocation3], %s1937
          %1940 = dma.done %s1935, 32
        $region64: #{tpu_custom_call.1} parent=59 // pred_fallthru
          _
        // Predicated region
        $region65: #{tpu_custom_call.1} parent=59 // pred_check
          %p1941 = pneg %p208
        $region66: #{tpu_custom_call.1} parent=59 // pred_check_branch
          %1943 = sbr.rel (%p1941) target = $region68
        $region67: #{tpu_custom_call.1} parent=59 // pred_region
          %s1944 = sand.u32 %s28, 1
          %s1945 = scalar_lea.sflag [#allocation6], %s1944
          %s1946 = sand.u32 %s193, 1
          %s1947 = smul.addr %s1946, 4
          %s1948 = scalar_lea.vmem [#allocation5], %s1947
          %1950 = dma.done %s1945, 64
        $region68: #{tpu_custom_call.1} parent=59 // pred_fallthru
          _
        // Predicated region
        $region69: #{tpu_custom_call.1} parent=59 // pred_check
          %p1951 = pneg %p234
        $region70: #{tpu_custom_call.1} parent=59 // pred_check_branch
          %1953 = sbr.rel (%p1951) target = $region72
        $region71: #{tpu_custom_call.1} parent=59 // pred_region
          %s1954 = sand.u32 %s28, 1
          %s1955 = scalar_lea.sflag [#allocation6], %s1954
          %s1956 = sand.u32 %s219, 1
          %s1957 = smul.addr %s1956, 4
          %s1958 = scalar_lea.vmem [#allocation7], %s1957
          %1960 = dma.done %s1955, 64
        $region72: #{tpu_custom_call.1} parent=59 // pred_fallthru
          _
      $region60: #{tpu_custom_call.1} parent=5 // pred_fallthru
        _
    $region6: #{tpu_custom_call.1} parent=1 // loop_footer
      %s26 = sadd.s32 1, %s22
    $region7: #{tpu_custom_call.1} parent=1 // loop_footer_branch
      %21 = sbr.rel target = $region3
    $region8: #{tpu_custom_call.1} parent=1 // loop_exit
      _
    %1961 = vsyncpa [#allocation4], 1
    %s1962 = scalar_lea.sflag [#allocation4], 1
    %1963 = vsyncpa %s1962, 1
    %1964 = vsyncpa [#allocation6], 1
    %s1965 = scalar_lea.sflag [#allocation6], 1
    %1966 = vsyncpa %s1965, 1

</llo_original>
